<compile_context>
chip_gen: v7x
topology: tpu7x:2x2x1
jax: 0.10.0
libtpu: 0.0.40
codegen_flags: <defaults>
</compile_context>

<pallas_src>
import functools

import jax
import jax.numpy as jnp
from jax.experimental import pallas as pl
from jax.experimental.pallas import tpu as pltpu

EPS = 1e-5
NEG_SLOPE = 0.2
VMEM_LIMIT = 32 * 1024 * 1024     # safe on every generation (v7x physical = 64 MiB)

_VMEM = pl.BlockSpec(memory_space=pltpu.MemorySpace.VMEM)


def _round_up(x, m):
    return (x + m - 1) // m * m


# ---------------------------------------------------------------------------
# Pallas kernels
# ---------------------------------------------------------------------------
def _conv_bn_lrelu_kernel(m_rows, p_ref, w_ref, b_ref, g_ref, beta_ref, o_ref):
    """Whole-layer fused: im2col matmul + batch-stat BN + LeakyReLU(0.2)."""
    z = jnp.dot(p_ref[...], w_ref[...], preferred_element_type=jnp.float32)
    z = z + b_ref[...]                                   # conv bias (cancels in BN)
    inv_m = 1.0 / m_rows
    mean = jnp.sum(z, axis=0, keepdims=True) * inv_m     # (1, Cout) f32
    c = z - mean
    var = jnp.sum(c * c, axis=0, keepdims=True) * inv_m  # two-pass (biased) variance
    scale = g_ref[...] * jax.lax.rsqrt(var + EPS)
    y = c * scale + beta_ref[...]
    y = jnp.maximum(y, NEG_SLOPE * y)                    # LeakyReLU(0.2)
    o_ref[...] = y.astype(o_ref.dtype)


def _conv_bn_lrelu_head_kernel(m_rows, n_batch,
                               p_ref, w_ref, b_ref, g_ref, beta_ref,
                               wfc_ref, bfc_ref, o_ref):
    """Last conv layer fused with the Linear(F->1) + sigmoid head."""
    z = jnp.dot(p_ref[...], w_ref[...], preferred_element_type=jnp.float32)
    z = z + b_ref[...]
    inv_m = 1.0 / m_rows
    mean = jnp.sum(z, axis=0, keepdims=True) * inv_m
    c = z - mean
    var = jnp.sum(c * c, axis=0, keepdims=True) * inv_m
    scale = g_ref[...] * jax.lax.rsqrt(var + EPS)
    y = c * scale + beta_ref[...]
    y = jnp.maximum(y, NEG_SLOPE * y)                    # (M, Cout) f32

    s_sp = m_rows // n_batch                             # spatial positions / sample
    if s_sp == 1:
        # (N, Cout) features; fc weight already in matching (1, Cout) order.
        logits = jnp.sum(y * wfc_ref[...], axis=1, keepdims=True) + bfc_ref[...]
    else:
        cout = y.shape[-1]
        yr = y.reshape(n_batch, s_sp, cout)              # leading-dim split only
        prod = yr * wfc_ref[...]                         # wfc: (s_sp, cout)
        logits = jnp.sum(jnp.sum(prod, axis=2, keepdims=True), axis=1) + bfc_ref[...]
    o_ref[...] = jax.nn.sigmoid(logits)                  # (N, 1) f32


# ---------------------------------------------------------------------------
# Host-side glue
# ---------------------------------------------------------------------------
def _im2col(x_nhwc, k=4, s=2, p=1):
    """Patch matrix for Conv2d(k=4, s=2, p=1); column order (kh, kw, Cin)."""
    N, H, W, Cin = x_nhwc.shape
    Ho = (H + 2 * p - k) // s + 1
    Wo = (W + 2 * p - k) // s + 1
    xp = jnp.pad(x_nhwc, ((0, 0), (p, p), (p, p), (0, 0)))
    cols = [xp[:, di:di + s * Ho:s, dj:dj + s * Wo:s, :]
            for di in range(k) for dj in range(k)]
    patches = jnp.concatenate(cols, axis=-1).reshape(N * Ho * Wo, k * k * Cin)
    return patches, (N, Ho, Wo)


def _prep_matmul_operands(patches, w):
    """K-pad to a 128 multiple (lane-dense MXU feed) and cast to bf16."""
    M, K = patches.shape
    Cout = w.shape[0]
    K_pad = _round_up(K, 128)
    wmat = jnp.transpose(w, (2, 3, 1, 0)).reshape(K, Cout)   # (kh,kw,Cin) x Cout
    if K_pad != K:
        patches = jnp.pad(patches, ((0, 0), (0, K_pad - K)))
        wmat = jnp.pad(wmat, ((0, K_pad - K), (0, 0)))
    return patches.astype(jnp.bfloat16), wmat.astype(jnp.bfloat16), M, K_pad, Cout


def conv_bn_lrelu(x_nhwc, w, b, gamma, beta):
    """Conv2d(4,2,1) + BatchNorm2d(batch stats) + LeakyReLU(0.2), one pallas_call."""
    patches, (N, Ho, Wo) = _im2col(x_nhwc)
    patches, wmat, M, K_pad, Cout = _prep_matmul_operands(patches, w)

    out = pl.pallas_call(
        functools.partial(_conv_bn_lrelu_kernel, M),
        out_shape=jax.ShapeDtypeStruct((M, Cout), jnp.bfloat16),
        in_specs=[_VMEM] * 5,
        out_specs=_VMEM,
        compiler_params=pltpu.CompilerParams(vmem_limit_bytes=VMEM_LIMIT),
        cost_estimate=pl.CostEstimate(
            flops=2 * M * K_pad * Cout + 10 * M * Cout,
            transcendentals=Cout,
            bytes_accessed=M * K_pad * 2 + K_pad * Cout * 2 + M * Cout * 2
                           + 3 * Cout * 4),
    )(patches, wmat,
      b.reshape(1, Cout).astype(jnp.float32),
      gamma.reshape(1, Cout).astype(jnp.float32),
      beta.reshape(1, Cout).astype(jnp.float32))
    return out.reshape(N, Ho, Wo, Cout)


def conv_bn_lrelu_head(x_nhwc, w, b, gamma, beta, fc_w, fc_b):
    """Last conv layer + BN + LReLU fused with Linear->sigmoid head."""
    patches, (N, Ho, Wo) = _im2col(x_nhwc)
    patches, wmat, M, K_pad, Cout = _prep_matmul_operands(patches, w)

    # fc weight: PyTorch flattens NCHW (C, Ho, Wo); permute once to NHWC order.
    S = Ho * Wo
    wfc = (fc_w.reshape(1, Cout, Ho, Wo)
               .transpose(0, 2, 3, 1)
               .reshape(S, Cout)
               .astype(jnp.float32))

    out = pl.pallas_call(
        functools.partial(_conv_bn_lrelu_head_kernel, M, N),
        out_shape=jax.ShapeDtypeStruct((N, 1), jnp.float32),
        in_specs=[_VMEM] * 7,
        out_specs=_VMEM,
        compiler_params=pltpu.CompilerParams(vmem_limit_bytes=VMEM_LIMIT),
        cost_estimate=pl.CostEstimate(
            flops=2 * M * K_pad * Cout + 12 * M * Cout + 2 * N * S * Cout,
            transcendentals=Cout + N,
            bytes_accessed=M * K_pad * 2 + K_pad * Cout * 2 + S * Cout * 4
                           + 3 * Cout * 4 + N * 4),
    )(patches, wmat,
      b.reshape(1, Cout).astype(jnp.float32),
      gamma.reshape(1, Cout).astype(jnp.float32),
      beta.reshape(1, Cout).astype(jnp.float32),
      wfc,
      fc_b.reshape(1, 1).astype(jnp.float32))
    return out


# ---------------------------------------------------------------------------
# Parameter init (deterministic, synthetic) + full forward
# ---------------------------------------------------------------------------
def init_params(key, image_size):
    nf = image_size
    chans = [(3, nf), (nf, 2 * nf), (2 * nf, 2 * nf), (2 * nf, 4 * nf)]
    params = {"convs": []}
    for cin, cout in chans:
        key, k1, k2, k3, k4 = jax.random.split(key, 5)
        params["convs"].append(dict(
            w=jax.random.normal(k1, (cout, cin, 4, 4), jnp.float32) * 0.05,
            b=jax.random.normal(k2, (cout,), jnp.float32) * 0.05,
            gamma=1.0 + 0.1 * jax.random.normal(k3, (cout,), jnp.float32),
            beta=0.1 * jax.random.normal(k4, (cout,), jnp.float32),
        ))
    feat = (image_size // 16) * (image_size // 16) * (4 * nf)
    key, k1, k2 = jax.random.split(key, 3)
    params["fc_w"] = jax.random.normal(k1, (1, feat), jnp.float32) * 0.05
    params["fc_b"] = jax.random.normal(k2, (1,), jnp.float32) * 0.05
    return params


@jax.jit
def discriminator_forward(params, x_nchw):
    # Single layout fix at entry; activations stay NHWC (bf16) between layers.
    # BatchNorm uses batch statistics (training-mode forward of the reference).
    h = jnp.transpose(x_nchw, (0, 2, 3, 1)).astype(jnp.bfloat16)
    convs = params["convs"]
    for layer in convs[:-1]:
        h = conv_bn_lrelu(h, layer["w"], layer["b"], layer["gamma"], layer["beta"])
    last = convs[-1]
    return conv_bn_lrelu_head(h, last["w"], last["b"], last["gamma"], last["beta"],
                              params["fc_w"], params["fc_b"])


if __name__ == "__main__":
    image_size = 16   # nf = 16; spatial: 16 -> 8 -> 4 -> 2 -> 1
    batch = 2
    key = jax.random.PRNGKey(0)
    kx, kp = jax.random.split(key)
    x = jax.random.normal(kx, (batch, 3, image_size, image_size), jnp.float32)
    params = init_params(kp, image_size)

    out = jax.block_until_ready(discriminator_forward(params, x))
    assert out.shape == (batch, 1)
    assert bool(jnp.all(jnp.isfinite(out)))
    assert bool(jnp.all((out >= 0.0) & (out <= 1.0)))
    print("KERNEL_OK")
</pallas_src>

<mosaic_0001>
module attributes {stable_mosaic.version = 11 : i64} {
  func.func @_conv_bn_lrelu_kernel(%arg0: memref<128x128xbf16, #tpu.memory_space<vmem>>, %arg1: memref<128x16xbf16, #tpu.memory_space<vmem>>, %arg2: memref<1x16xf32, #tpu.memory_space<vmem>>, %arg3: memref<1x16xf32, #tpu.memory_space<vmem>>, %arg4: memref<1x16xf32, #tpu.memory_space<vmem>>, %arg5: memref<128x16xbf16, #tpu.memory_space<vmem>>) attributes {dimension_semantics = [], scalar_prefetch = 0 : i64, scratch_operands = 0 : i64, tpu.core_type = #tpu.core_type<tc>} {
    %c0 = arith.constant 0 : index
    %c0_0 = arith.constant 0 : index
    %0 = vector.load %arg0[%c0, %c0_0] : memref<128x128xbf16, #tpu.memory_space<vmem>>, vector<128x128xbf16>
    %c0_1 = arith.constant 0 : index
    %c0_2 = arith.constant 0 : index
    %1 = vector.load %arg1[%c0_1, %c0_2] : memref<128x16xbf16, #tpu.memory_space<vmem>>, vector<128x16xbf16>
    %cst = arith.constant dense<0.000000e+00> : vector<128x16xf32>
    %2 = tpu.matmul %0, %1, %cst {dimension_numbers = #tpu.dot_dimension_numbers<[1], [0], [0], [1], [0, 0, 1, 1], [], []>} : vector<128x128xbf16>, vector<128x16xbf16>, vector<128x16xf32> -> vector<128x16xf32>
    %c0_3 = arith.constant 0 : index
    %c0_4 = arith.constant 0 : index
    %3 = vector.load %arg2[%c0_3, %c0_4] : memref<1x16xf32, #tpu.memory_space<vmem>>, vector<1x16xf32>
    %4 = vector.broadcast %3 : vector<1x16xf32> to vector<128x16xf32>
    %5 = arith.addf %2, %4 : vector<128x16xf32>
    %cst_5 = arith.constant dense<0.000000e+00> : vector<16xf32>
    %6 = vector.multi_reduction <add>, %5, %cst_5 [0] : vector<128x16xf32> to vector<16xf32>
    %7 = vector.shape_cast %6 : vector<16xf32> to vector<1x16xf32>
    %cst_6 = arith.constant 7.812500e-03 : f32
    %8 = vector.broadcast %cst_6 : f32 to vector<1x16xf32>
    %9 = arith.mulf %7, %8 : vector<1x16xf32>
    %10 = vector.broadcast %9 : vector<1x16xf32> to vector<128x16xf32>
    %11 = arith.subf %5, %10 : vector<128x16xf32>
    %12 = arith.mulf %11, %11 : vector<128x16xf32>
    %cst_7 = arith.constant dense<0.000000e+00> : vector<16xf32>
    %13 = vector.multi_reduction <add>, %12, %cst_7 [0] : vector<128x16xf32> to vector<16xf32>
    %14 = vector.shape_cast %13 : vector<16xf32> to vector<1x16xf32>
    %cst_8 = arith.constant 7.812500e-03 : f32
    %15 = vector.broadcast %cst_8 : f32 to vector<1x16xf32>
    %16 = arith.mulf %14, %15 : vector<1x16xf32>
    %c0_9 = arith.constant 0 : index
    %c0_10 = arith.constant 0 : index
    %17 = vector.load %arg3[%c0_9, %c0_10] : memref<1x16xf32, #tpu.memory_space<vmem>>, vector<1x16xf32>
    %cst_11 = arith.constant 9.99999974E-6 : f32
    %18 = vector.broadcast %cst_11 : f32 to vector<1x16xf32>
    %19 = arith.addf %16, %18 : vector<1x16xf32>
    %20 = math.rsqrt %19 : vector<1x16xf32>
    %21 = arith.mulf %17, %20 : vector<1x16xf32>
    %22 = vector.broadcast %21 : vector<1x16xf32> to vector<128x16xf32>
    %23 = arith.mulf %11, %22 : vector<128x16xf32>
    %c0_12 = arith.constant 0 : index
    %c0_13 = arith.constant 0 : index
    %24 = vector.load %arg4[%c0_12, %c0_13] : memref<1x16xf32, #tpu.memory_space<vmem>>, vector<1x16xf32>
    %25 = vector.broadcast %24 : vector<1x16xf32> to vector<128x16xf32>
    %26 = arith.addf %23, %25 : vector<128x16xf32>
    %cst_14 = arith.constant 2.000000e-01 : f32
    %27 = vector.broadcast %cst_14 : f32 to vector<128x16xf32>
    %28 = arith.mulf %27, %26 : vector<128x16xf32>
    %29 = arith.maximumf %26, %28 : vector<128x16xf32>
    %30 = arith.truncf %29 : vector<128x16xf32> to vector<128x16xbf16>
    %c0_15 = arith.constant 0 : index
    %c0_16 = arith.constant 0 : index
    %31 = vector.load %arg5[%c0_15, %c0_16] : memref<128x16xbf16, #tpu.memory_space<vmem>>, vector<128x16xbf16>
    tpu.vector_store %arg5[%c0_15, %c0_16], %30 {strides = array<i32>} : memref<128x16xbf16, #tpu.memory_space<vmem>>, vector<128x16xbf16>,
    return
  }
}

module attributes {stable_mosaic.version = 11 : i64} {
  func.func @_conv_bn_lrelu_kernel(%arg0: memref<32x256xbf16, #tpu.memory_space<vmem>>, %arg1: memref<256x32xbf16, #tpu.memory_space<vmem>>, %arg2: memref<1x32xf32, #tpu.memory_space<vmem>>, %arg3: memref<1x32xf32, #tpu.memory_space<vmem>>, %arg4: memref<1x32xf32, #tpu.memory_space<vmem>>, %arg5: memref<32x32xbf16, #tpu.memory_space<vmem>>) attributes {dimension_semantics = [], scalar_prefetch = 0 : i64, scratch_operands = 0 : i64, tpu.core_type = #tpu.core_type<tc>} {
    %c0 = arith.constant 0 : index
    %c0_0 = arith.constant 0 : index
    %0 = vector.load %arg0[%c0, %c0_0] : memref<32x256xbf16, #tpu.memory_space<vmem>>, vector<32x256xbf16>
    %c0_1 = arith.constant 0 : index
    %c0_2 = arith.constant 0 : index
    %1 = vector.load %arg1[%c0_1, %c0_2] : memref<256x32xbf16, #tpu.memory_space<vmem>>, vector<256x32xbf16>
    %cst = arith.constant dense<0.000000e+00> : vector<32x32xf32>
    %2 = tpu.matmul %0, %1, %cst {dimension_numbers = #tpu.dot_dimension_numbers<[1], [0], [0], [1], [0, 0, 1, 1], [], []>} : vector<32x256xbf16>, vector<256x32xbf16>, vector<32x32xf32> -> vector<32x32xf32>
    %c0_3 = arith.constant 0 : index
    %c0_4 = arith.constant 0 : index
    %3 = vector.load %arg2[%c0_3, %c0_4] : memref<1x32xf32, #tpu.memory_space<vmem>>, vector<1x32xf32>
    %4 = vector.broadcast %3 : vector<1x32xf32> to vector<32x32xf32>
    %5 = arith.addf %2, %4 : vector<32x32xf32>
    %cst_5 = arith.constant dense<0.000000e+00> : vector<32xf32>
    %6 = vector.multi_reduction <add>, %5, %cst_5 [0] : vector<32x32xf32> to vector<32xf32>
    %7 = vector.shape_cast %6 : vector<32xf32> to vector<1x32xf32>
    %cst_6 = arith.constant 3.125000e-02 : f32
    %8 = vector.broadcast %cst_6 : f32 to vector<1x32xf32>
    %9 = arith.mulf %7, %8 : vector<1x32xf32>
    %10 = vector.broadcast %9 : vector<1x32xf32> to vector<32x32xf32>
    %11 = arith.subf %5, %10 : vector<32x32xf32>
    %12 = arith.mulf %11, %11 : vector<32x32xf32>
    %cst_7 = arith.constant dense<0.000000e+00> : vector<32xf32>
    %13 = vector.multi_reduction <add>, %12, %cst_7 [0] : vector<32x32xf32> to vector<32xf32>
    %14 = vector.shape_cast %13 : vector<32xf32> to vector<1x32xf32>
    %cst_8 = arith.constant 3.125000e-02 : f32
    %15 = vector.broadcast %cst_8 : f32 to vector<1x32xf32>
    %16 = arith.mulf %14, %15 : vector<1x32xf32>
    %c0_9 = arith.constant 0 : index
    %c0_10 = arith.constant 0 : index
    %17 = vector.load %arg3[%c0_9, %c0_10] : memref<1x32xf32, #tpu.memory_space<vmem>>, vector<1x32xf32>
    %cst_11 = arith.constant 9.99999974E-6 : f32
    %18 = vector.broadcast %cst_11 : f32 to vector<1x32xf32>
    %19 = arith.addf %16, %18 : vector<1x32xf32>
    %20 = math.rsqrt %19 : vector<1x32xf32>
    %21 = arith.mulf %17, %20 : vector<1x32xf32>
    %22 = vector.broadcast %21 : vector<1x32xf32> to vector<32x32xf32>
    %23 = arith.mulf %11, %22 : vector<32x32xf32>
    %c0_12 = arith.constant 0 : index
    %c0_13 = arith.constant 0 : index
    %24 = vector.load %arg4[%c0_12, %c0_13] : memref<1x32xf32, #tpu.memory_space<vmem>>, vector<1x32xf32>
    %25 = vector.broadcast %24 : vector<1x32xf32> to vector<32x32xf32>
    %26 = arith.addf %23, %25 : vector<32x32xf32>
    %cst_14 = arith.constant 2.000000e-01 : f32
    %27 = vector.broadcast %cst_14 : f32 to vector<32x32xf32>
    %28 = arith.mulf %27, %26 : vector<32x32xf32>
    %29 = arith.maximumf %26, %28 : vector<32x32xf32>
    %30 = arith.truncf %29 : vector<32x32xf32> to vector<32x32xbf16>
    %c0_15 = arith.constant 0 : index
    %c0_16 = arith.constant 0 : index
    %31 = vector.load %arg5[%c0_15, %c0_16] : memref<32x32xbf16, #tpu.memory_space<vmem>>, vector<32x32xbf16>
    tpu.vector_store %arg5[%c0_15, %c0_16], %30 {strides = array<i32>} : memref<32x32xbf16, #tpu.memory_space<vmem>>, vector<32x32xbf16>,
    return
  }
}

module attributes {stable_mosaic.version = 11 : i64} {
  func.func @_conv_bn_lrelu_kernel(%arg0: memref<8x512xbf16, #tpu.memory_space<vmem>>, %arg1: memref<512x32xbf16, #tpu.memory_space<vmem>>, %arg2: memref<1x32xf32, #tpu.memory_space<vmem>>, %arg3: memref<1x32xf32, #tpu.memory_space<vmem>>, %arg4: memref<1x32xf32, #tpu.memory_space<vmem>>, %arg5: memref<8x32xbf16, #tpu.memory_space<vmem>>) attributes {dimension_semantics = [], scalar_prefetch = 0 : i64, scratch_operands = 0 : i64, tpu.core_type = #tpu.core_type<tc>} {
    %c0 = arith.constant 0 : index
    %c0_0 = arith.constant 0 : index
    %0 = vector.load %arg0[%c0, %c0_0] : memref<8x512xbf16, #tpu.memory_space<vmem>>, vector<8x512xbf16>
    %c0_1 = arith.constant 0 : index
    %c0_2 = arith.constant 0 : index
    %1 = vector.load %arg1[%c0_1, %c0_2] : memref<512x32xbf16, #tpu.memory_space<vmem>>, vector<512x32xbf16>
    %cst = arith.constant dense<0.000000e+00> : vector<8x32xf32>
    %2 = tpu.matmul %0, %1, %cst {dimension_numbers = #tpu.dot_dimension_numbers<[1], [0], [0], [1], [0, 0, 1, 1], [], []>} : vector<8x512xbf16>, vector<512x32xbf16>, vector<8x32xf32> -> vector<8x32xf32>
    %c0_3 = arith.constant 0 : index
    %c0_4 = arith.constant 0 : index
    %3 = vector.load %arg2[%c0_3, %c0_4] : memref<1x32xf32, #tpu.memory_space<vmem>>, vector<1x32xf32>
    %4 = vector.broadcast %3 : vector<1x32xf32> to vector<8x32xf32>
    %5 = arith.addf %2, %4 : vector<8x32xf32>
    %cst_5 = arith.constant dense<0.000000e+00> : vector<32xf32>
    %6 = vector.multi_reduction <add>, %5, %cst_5 [0] : vector<8x32xf32> to vector<32xf32>
    %7 = vector.shape_cast %6 : vector<32xf32> to vector<1x32xf32>
    %cst_6 = arith.constant 1.250000e-01 : f32
    %8 = vector.broadcast %cst_6 : f32 to vector<1x32xf32>
    %9 = arith.mulf %7, %8 : vector<1x32xf32>
    %10 = vector.broadcast %9 : vector<1x32xf32> to vector<8x32xf32>
    %11 = arith.subf %5, %10 : vector<8x32xf32>
    %12 = arith.mulf %11, %11 : vector<8x32xf32>
    %cst_7 = arith.constant dense<0.000000e+00> : vector<32xf32>
    %13 = vector.multi_reduction <add>, %12, %cst_7 [0] : vector<8x32xf32> to vector<32xf32>
    %14 = vector.shape_cast %13 : vector<32xf32> to vector<1x32xf32>
    %cst_8 = arith.constant 1.250000e-01 : f32
    %15 = vector.broadcast %cst_8 : f32 to vector<1x32xf32>
    %16 = arith.mulf %14, %15 : vector<1x32xf32>
    %c0_9 = arith.constant 0 : index
    %c0_10 = arith.constant 0 : index
    %17 = vector.load %arg3[%c0_9, %c0_10] : memref<1x32xf32, #tpu.memory_space<vmem>>, vector<1x32xf32>
    %cst_11 = arith.constant 9.99999974E-6 : f32
    %18 = vector.broadcast %cst_11 : f32 to vector<1x32xf32>
    %19 = arith.addf %16, %18 : vector<1x32xf32>
    %20 = math.rsqrt %19 : vector<1x32xf32>
    %21 = arith.mulf %17, %20 : vector<1x32xf32>
    %22 = vector.broadcast %21 : vector<1x32xf32> to vector<8x32xf32>
    %23 = arith.mulf %11, %22 : vector<8x32xf32>
    %c0_12 = arith.constant 0 : index
    %c0_13 = arith.constant 0 : index
    %24 = vector.load %arg4[%c0_12, %c0_13] : memref<1x32xf32, #tpu.memory_space<vmem>>, vector<1x32xf32>
    %25 = vector.broadcast %24 : vector<1x32xf32> to vector<8x32xf32>
    %26 = arith.addf %23, %25 : vector<8x32xf32>
    %cst_14 = arith.constant 2.000000e-01 : f32
    %27 = vector.broadcast %cst_14 : f32 to vector<8x32xf32>
    %28 = arith.mulf %27, %26 : vector<8x32xf32>
    %29 = arith.maximumf %26, %28 : vector<8x32xf32>
    %30 = arith.truncf %29 : vector<8x32xf32> to vector<8x32xbf16>
    %c0_15 = arith.constant 0 : index
    %c0_16 = arith.constant 0 : index
    %31 = vector.load %arg5[%c0_15, %c0_16] : memref<8x32xbf16, #tpu.memory_space<vmem>>, vector<8x32xbf16>
    tpu.vector_store %arg5[%c0_15, %c0_16], %30 {strides = array<i32>} : memref<8x32xbf16, #tpu.memory_space<vmem>>, vector<8x32xbf16>,
    return
  }
}

module attributes {stable_mosaic.version = 11 : i64} {
  func.func @_conv_bn_lrelu_head_kernel(%arg0: memref<2x512xbf16, #tpu.memory_space<vmem>>, %arg1: memref<512x64xbf16, #tpu.memory_space<vmem>>, %arg2: memref<1x64xf32, #tpu.memory_space<vmem>>, %arg3: memref<1x64xf32, #tpu.memory_space<vmem>>, %arg4: memref<1x64xf32, #tpu.memory_space<vmem>>, %arg5: memref<1x64xf32, #tpu.memory_space<vmem>>, %arg6: memref<1x1xf32, #tpu.memory_space<vmem>>, %arg7: memref<2x1xf32, #tpu.memory_space<vmem>>) attributes {dimension_semantics = [], scalar_prefetch = 0 : i64, scratch_operands = 0 : i64, tpu.core_type = #tpu.core_type<tc>} {
    %c0 = arith.constant 0 : index
    %c0_0 = arith.constant 0 : index
    %0 = vector.load %arg0[%c0, %c0_0] : memref<2x512xbf16, #tpu.memory_space<vmem>>, vector<2x512xbf16>
    %c0_1 = arith.constant 0 : index
    %c0_2 = arith.constant 0 : index
    %1 = vector.load %arg1[%c0_1, %c0_2] : memref<512x64xbf16, #tpu.memory_space<vmem>>, vector<512x64xbf16>
    %cst = arith.constant dense<0.000000e+00> : vector<2x64xf32>
    %2 = tpu.matmul %0, %1, %cst {dimension_numbers = #tpu.dot_dimension_numbers<[1], [0], [0], [1], [0, 0, 1, 1], [], []>} : vector<2x512xbf16>, vector<512x64xbf16>, vector<2x64xf32> -> vector<2x64xf32>
    %c0_3 = arith.constant 0 : index
    %c0_4 = arith.constant 0 : index
    %3 = vector.load %arg2[%c0_3, %c0_4] : memref<1x64xf32, #tpu.memory_space<vmem>>, vector<1x64xf32>
    %4 = vector.broadcast %3 : vector<1x64xf32> to vector<2x64xf32>
    %5 = arith.addf %2, %4 : vector<2x64xf32>
    %cst_5 = arith.constant dense<0.000000e+00> : vector<64xf32>
    %6 = vector.multi_reduction <add>, %5, %cst_5 [0] : vector<2x64xf32> to vector<64xf32>
    %7 = vector.shape_cast %6 : vector<64xf32> to vector<1x64xf32>
    %cst_6 = arith.constant 5.000000e-01 : f32
    %8 = vector.broadcast %cst_6 : f32 to vector<1x64xf32>
    %9 = arith.mulf %7, %8 : vector<1x64xf32>
    %10 = vector.broadcast %9 : vector<1x64xf32> to vector<2x64xf32>
    %11 = arith.subf %5, %10 : vector<2x64xf32>
    %12 = arith.mulf %11, %11 : vector<2x64xf32>
    %cst_7 = arith.constant dense<0.000000e+00> : vector<64xf32>
    %13 = vector.multi_reduction <add>, %12, %cst_7 [0] : vector<2x64xf32> to vector<64xf32>
    %14 = vector.shape_cast %13 : vector<64xf32> to vector<1x64xf32>
    %cst_8 = arith.constant 5.000000e-01 : f32
    %15 = vector.broadcast %cst_8 : f32 to vector<1x64xf32>
    %16 = arith.mulf %14, %15 : vector<1x64xf32>
    %c0_9 = arith.constant 0 : index
    %c0_10 = arith.constant 0 : index
    %17 = vector.load %arg3[%c0_9, %c0_10] : memref<1x64xf32, #tpu.memory_space<vmem>>, vector<1x64xf32>
    %cst_11 = arith.constant 9.99999974E-6 : f32
    %18 = vector.broadcast %cst_11 : f32 to vector<1x64xf32>
    %19 = arith.addf %16, %18 : vector<1x64xf32>
    %20 = math.rsqrt %19 : vector<1x64xf32>
    %21 = arith.mulf %17, %20 : vector<1x64xf32>
    %22 = vector.broadcast %21 : vector<1x64xf32> to vector<2x64xf32>
    %23 = arith.mulf %11, %22 : vector<2x64xf32>
    %c0_12 = arith.constant 0 : index
    %c0_13 = arith.constant 0 : index
    %24 = vector.load %arg4[%c0_12, %c0_13] : memref<1x64xf32, #tpu.memory_space<vmem>>, vector<1x64xf32>
    %25 = vector.broadcast %24 : vector<1x64xf32> to vector<2x64xf32>
    %26 = arith.addf %23, %25 : vector<2x64xf32>
    %cst_14 = arith.constant 2.000000e-01 : f32
    %27 = vector.broadcast %cst_14 : f32 to vector<2x64xf32>
    %28 = arith.mulf %27, %26 : vector<2x64xf32>
    %29 = arith.maximumf %26, %28 : vector<2x64xf32>
    %c0_15 = arith.constant 0 : index
    %c0_16 = arith.constant 0 : index
    %30 = vector.load %arg5[%c0_15, %c0_16] : memref<1x64xf32, #tpu.memory_space<vmem>>, vector<1x64xf32>
    %31 = vector.broadcast %30 : vector<1x64xf32> to vector<2x64xf32>
    %32 = arith.mulf %29, %31 : vector<2x64xf32>
    %cst_17 = arith.constant dense<0.000000e+00> : vector<2xf32>
    %33 = vector.multi_reduction <add>, %32, %cst_17 [1] : vector<2x64xf32> to vector<2xf32>
    %34 = vector.shape_cast %33 : vector<2xf32> to vector<2x1xf32>
    %c0_18 = arith.constant 0 : index
    %c0_19 = arith.constant 0 : index
    %35 = vector.load %arg6[%c0_18, %c0_19] : memref<1x1xf32, #tpu.memory_space<vmem>>, vector<1x1xf32>
    %36 = vector.broadcast %35 : vector<1x1xf32> to vector<2x1xf32>
    %37 = arith.addf %34, %36 : vector<2x1xf32>
    %38 = arith.negf %37 : vector<2x1xf32>
    %39 = math.exp %38 : vector<2x1xf32>
    %cst_20 = arith.constant 1.000000e+00 : f32
    %40 = vector.broadcast %cst_20 : f32 to vector<2x1xf32>
    %41 = arith.addf %40, %39 : vector<2x1xf32>
    %42 = arith.divf %40, %41 : vector<2x1xf32>
    %c0_21 = arith.constant 0 : index
    %c0_22 = arith.constant 0 : index
    %43 = vector.load %arg7[%c0_21, %c0_22] : memref<2x1xf32, #tpu.memory_space<vmem>>, vector<2x1xf32>
    tpu.vector_store %arg7[%c0_21, %c0_22], %42 {strides = array<i32>} : memref<2x1xf32, #tpu.memory_space<vmem>>, vector<2x1xf32>,
    return
  }
}

</mosaic_0001>

<llo_original>
// kernel: discriminator_forward.4
$region0: #{discriminator_forward.4}
  #allocation0 [shape = 'u32[]', space=smem, size = 0x4, offset = 0x4, fixed_abs, tag = 'smem constant byte address 0x4 - core index']
  #allocation1 [shape = 'u32[144,128]{1,0:T(1,128)}', space=vmem, size = 0x12000, scoped, tag = 'internal scratch']
  %s0 = inlined_call_operand.vmem [shape: bf16[128,128], index: 0, kind: input, shape index: {}]
  %s1 = inlined_call_operand.vmem [shape: bf16[128,16], index: 1, kind: input, shape index: {}]
  %s2 = inlined_call_operand.vmem [shape: f32[1,16], index: 2, kind: input, shape index: {}]
  %s3 = inlined_call_operand.vmem [shape: f32[1,16], index: 3, kind: input, shape index: {}]
  %s4 = inlined_call_operand.vmem [shape: f32[1,16], index: 4, kind: input, shape index: {}]
  %s5 = inlined_call_operand.vmem [shape: bf16[128,16], index: 5, kind: output, shape index: {}]
  %s6 = sld [smem:[#allocation0]]
  $region30: #{discriminator_forward.4} parent=0
    _
  %s8 = ssub.s32 1, %s6
  %s9 = scalar_select 0, %s8, %s6
  // Predicated region
  $region2: #{discriminator_forward.4} parent=0 // pred_check
    _
  $region3: #{discriminator_forward.4} parent=0 // pred_check_branch
    %11 = sbr.rel (0) target = $region5
  $region4: #{discriminator_forward.4} parent=0 // pred_region
    _
  $region5: #{discriminator_forward.4} parent=0 // pred_fallthru
    _
  // Predicated region
  $region6: #{discriminator_forward.4} parent=0 // pred_check
    _
  $region7: #{discriminator_forward.4} parent=0 // pred_check_branch
    %13 = sbr.rel (0) target = $region9
  $region8: #{discriminator_forward.4} parent=0 // pred_region
    _
  $region9: #{discriminator_forward.4} parent=0 // pred_fallthru
    _
  // Predicated region
  $region10: #{discriminator_forward.4} parent=0 // pred_check
    _
  $region11: #{discriminator_forward.4} parent=0 // pred_check_branch
    %15 = sbr.rel (0) target = $region13
  $region12: #{discriminator_forward.4} parent=0 // pred_region
    _
  $region13: #{discriminator_forward.4} parent=0 // pred_fallthru
    _
  // Predicated region
  $region14: #{discriminator_forward.4} parent=0 // pred_check
    _
  $region15: #{discriminator_forward.4} parent=0 // pred_check_branch
    %17 = sbr.rel (0) target = $region17
  $region16: #{discriminator_forward.4} parent=0 // pred_region
    _
  $region17: #{discriminator_forward.4} parent=0 // pred_fallthru
    _
  // Predicated region
  $region18: #{discriminator_forward.4} parent=0 // pred_check
    _
  $region19: #{discriminator_forward.4} parent=0 // pred_check_branch
    %19 = sbr.rel (0) target = $region21
  $region20: #{discriminator_forward.4} parent=0 // pred_region
    _
  $region21: #{discriminator_forward.4} parent=0 // pred_fallthru
    _
  %v21 = vld [vmem:[%s0] sm:$0xf]
  %v22 = vld [vmem:[%s0 + $0x4] sm:$0xf]
  %v23 = vld [vmem:[%s0 + $0x8] sm:$0xf]
  %v24 = vld [vmem:[%s0 + $0xc] sm:$0xf]
  %v25 = vld [vmem:[%s0 + $0x10] sm:$0xf]
  %v26 = vld [vmem:[%s0 + $0x14] sm:$0xf]
  %v27 = vld [vmem:[%s0 + $0x18] sm:$0xf]
  %v28 = vld [vmem:[%s0 + $0x1c] sm:$0xf]
  %v29 = vld [vmem:[%s0 + $0x20] sm:$0xf]
  %v30 = vld [vmem:[%s0 + $0x24] sm:$0xf]
  %v31 = vld [vmem:[%s0 + $0x28] sm:$0xf]
  %v32 = vld [vmem:[%s0 + $0x2c] sm:$0xf]
  %v33 = vld [vmem:[%s0 + $0x30] sm:$0xf]
  %v34 = vld [vmem:[%s0 + $0x34] sm:$0xf]
  %v35 = vld [vmem:[%s0 + $0x38] sm:$0xf]
  %v36 = vld [vmem:[%s0 + $0x3c] sm:$0xf]
  %v37 = vld [vmem:[%s1] sm:$0xf]
  %v38 = vld [vmem:[%s1 + $0x4] sm:$0xf]
  %v39 = vld [vmem:[%s1 + $0x8] sm:$0xf]
  %v40 = vld [vmem:[%s1 + $0xc] sm:$0xf]
  %v41 = vld [vmem:[%s1 + $0x10] sm:$0xf]
  %v42 = vld [vmem:[%s1 + $0x14] sm:$0xf]
  %v43 = vld [vmem:[%s1 + $0x18] sm:$0xf]
  %v44 = vld [vmem:[%s1 + $0x1c] sm:$0xf]
  %v45 = vld [vmem:[%s1 + $0x20] sm:$0xf]
  %v46 = vld [vmem:[%s1 + $0x24] sm:$0xf]
  %v47 = vld [vmem:[%s1 + $0x28] sm:$0xf]
  %v48 = vld [vmem:[%s1 + $0x2c] sm:$0xf]
  %v49 = vld [vmem:[%s1 + $0x30] sm:$0xf]
  %v50 = vld [vmem:[%s1 + $0x34] sm:$0xf]
  %v51 = vld [vmem:[%s1 + $0x38] sm:$0xf]
  %v52 = vld [vmem:[%s1 + $0x3c] sm:$0xf]
  %v53 = vld [vmem:[%s2] sm:$0x1]
  %v55 = vlaneseq
  %v56 = vshrl.u32 %v55, 7
  %v57 = vsub.s32 0, %v56
  %v58 = vrot.slane %v53, %v57
  %v76 = vunpack.c.l.b16 %v21
  %v77 = vunpack.c.l.b16 %v22
  %v78 = vunpack.c.l.b16 %v23
  %v79 = vunpack.c.l.b16 %v24
  %v80 = vunpack.c.l.b16 %v25
  %v81 = vunpack.c.l.b16 %v26
  %v82 = vunpack.c.l.b16 %v27
  %v83 = vunpack.c.l.b16 %v28
  %v84 = vunpack.c.l.b16 %v29
  %v85 = vunpack.c.l.b16 %v30
  %v86 = vunpack.c.l.b16 %v31
  %v87 = vunpack.c.l.b16 %v32
  %v88 = vunpack.c.l.b16 %v33
  %v89 = vunpack.c.l.b16 %v34
  %v90 = vunpack.c.l.b16 %v35
  %v91 = vunpack.c.l.b16 %v36
  %v92 = vpack.c.b16 %v77, %v76
  %v93 = vpack.c.b16 %v79, %v78
  %v94 = vpack.c.b16 %v81, %v80
  %v95 = vpack.c.b16 %v83, %v82
  %v96 = vpack.c.b16 %v85, %v84
  %v97 = vpack.c.b16 %v87, %v86
  %v98 = vpack.c.b16 %v89, %v88
  %v99 = vpack.c.b16 %v91, %v90
  %v124 = vunpack.c.l.b16 %v37
  %v125 = vunpack.c.l.b16 %v38
  %v126 = vunpack.c.l.b16 %v39
  %v127 = vunpack.c.l.b16 %v40
  %v128 = vunpack.c.l.b16 %v41
  %v129 = vunpack.c.l.b16 %v42
  %v130 = vunpack.c.l.b16 %v43
  %v131 = vunpack.c.l.b16 %v44
  %v132 = vunpack.c.l.b16 %v45
  %v133 = vunpack.c.l.b16 %v46
  %v134 = vunpack.c.l.b16 %v47
  %v135 = vunpack.c.l.b16 %v48
  %v136 = vunpack.c.l.b16 %v49
  %v137 = vunpack.c.l.b16 %v50
  %v138 = vunpack.c.l.b16 %v51
  %v139 = vunpack.c.l.b16 %v52
  %v140 = vpack.c.b16 %v125, %v124
  %v141 = vpack.c.b16 %v127, %v126
  %v142 = vpack.c.b16 %v129, %v128
  %v143 = vpack.c.b16 %v131, %v130
  %v144 = vpack.c.b16 %v133, %v132
  %v145 = vpack.c.b16 %v135, %v134
  %v146 = vpack.c.b16 %v137, %v136
  %v147 = vpack.c.b16 %v139, %v138
  %156 = vmatprep.subr.bf16.mxu0 0
  %157 = vmatpush1.bf16.msra.mxu0 %v140
  %158 = vmatprep.subr.bf16.mxu0 0
  %159 = vmatpush1.bf16.msra.mxu0 %v141
  %160 = vmatprep.subr.bf16.mxu0 0
  %161 = vmatpush1.bf16.msra.mxu0 %v142
  %162 = vmatprep.subr.bf16.mxu0 0
  %163 = vmatpush1.bf16.msra.mxu0 %v143
  %164 = vmatprep.subr.bf16.mxu0 0
  %165 = vmatpush1.bf16.msra.mxu0 %v144
  %166 = vmatprep.subr.bf16.mxu0 0
  %167 = vmatpush1.bf16.msra.mxu0 %v145
  %168 = vmatprep.subr.bf16.mxu0 0
  %169 = vmatpush1.bf16.msra.mxu0 %v146
  %170 = vmatprep.subr.bf16.mxu0 0
  %171 = vmatpush1.bf16.msra.mxu0 %v147
  %172 = vmatprep.subr.bf16.mxu0 0
  %173 = vmatpush1.bf16.msra.mxu0 0
  %174 = vmatprep.subr.bf16.mxu0 0
  %175 = vmatpush1.bf16.msra.mxu0 0
  %176 = vmatprep.subr.bf16.mxu0 0
  %177 = vmatpush1.bf16.msra.mxu0 0
  %178 = vmatprep.subr.bf16.mxu0 0
  %179 = vmatpush1.bf16.msra.mxu0 0
  %180 = vmatprep.subr.bf16.mxu0 0
  %181 = vmatpush1.bf16.msra.mxu0 0
  %182 = vmatprep.subr.bf16.mxu0 0
  %183 = vmatpush1.bf16.msra.mxu0 0
  %184 = vmatprep.subr.bf16.mxu0 0
  %185 = vmatpush1.bf16.msra.mxu0 0
  %186 = vmatprep.subr.bf16.mxu0 0
  %187 = vmatpush1.bf16.msra.mxu0 0
  %188 = vmatprep.mubr.bf16.mxu0 0
  %189 = vmatmul.mubr.bf16.gmra.mrb[0].mxu0 %v92
  %v190 = vpop.f32.mrb[0].mxu0
  %v191 = vadd.f32 %v58, %v190
  %v192 = vpop.f32.mrb[0].mxu0
  %v193 = vpop.f32.mrb[0].mxu0
  %v194 = vadd.f32 %v58, %v193
  %v195 = vpop.f32.mrb[0].mxu0
  %196 = vmatprep.mubr.bf16.mxu0 0
  %197 = vmatmul.mubr.bf16.gmra.mrb[0].mxu0 %v93
  %v198 = vpop.f32.mrb[0].mxu0
  %v199 = vadd.f32 %v58, %v198
  %v200 = vpop.f32.mrb[0].mxu0
  %v201 = vpop.f32.mrb[0].mxu0
  %v202 = vadd.f32 %v58, %v201
  %v203 = vpop.f32.mrb[0].mxu0
  %204 = vmatprep.mubr.bf16.mxu0 0
  %205 = vmatmul.mubr.bf16.gmra.mrb[0].mxu0 %v94
  %v206 = vpop.f32.mrb[0].mxu0
  %v207 = vadd.f32 %v58, %v206
  %v208 = vpop.f32.mrb[0].mxu0
  %v209 = vpop.f32.mrb[0].mxu0
  %v210 = vadd.f32 %v58, %v209
  %v211 = vpop.f32.mrb[0].mxu0
  %212 = vmatprep.mubr.bf16.mxu0 0
  %213 = vmatmul.mubr.bf16.gmra.mrb[0].mxu0 %v95
  %v214 = vpop.f32.mrb[0].mxu0
  %v215 = vadd.f32 %v58, %v214
  %v216 = vpop.f32.mrb[0].mxu0
  %v217 = vpop.f32.mrb[0].mxu0
  %v218 = vadd.f32 %v58, %v217
  %v219 = vpop.f32.mrb[0].mxu0
  %220 = vmatprep.mubr.bf16.mxu0 0
  %221 = vmatmul.mubr.bf16.gmra.mrb[0].mxu0 %v96
  %v222 = vpop.f32.mrb[0].mxu0
  %v223 = vadd.f32 %v58, %v222
  %v224 = vpop.f32.mrb[0].mxu0
  %v225 = vpop.f32.mrb[0].mxu0
  %v226 = vadd.f32 %v58, %v225
  %v227 = vpop.f32.mrb[0].mxu0
  %228 = vmatprep.mubr.bf16.mxu0 0
  %229 = vmatmul.mubr.bf16.gmra.mrb[0].mxu0 %v97
  %v230 = vpop.f32.mrb[0].mxu0
  %v231 = vadd.f32 %v58, %v230
  %v232 = vpop.f32.mrb[0].mxu0
  %v233 = vpop.f32.mrb[0].mxu0
  %v234 = vadd.f32 %v58, %v233
  %v235 = vpop.f32.mrb[0].mxu0
  %236 = vmatprep.mubr.bf16.mxu0 0
  %237 = vmatmul.mubr.bf16.gmra.mrb[0].mxu0 %v98
  %v238 = vpop.f32.mrb[0].mxu0
  %v239 = vadd.f32 %v58, %v238
  %v240 = vpop.f32.mrb[0].mxu0
  %v241 = vpop.f32.mrb[0].mxu0
  %v242 = vadd.f32 %v58, %v241
  %v243 = vpop.f32.mrb[0].mxu0
  %244 = vmatprep.mubr.bf16.mxu0 0
  %245 = vmatmul.mubr.bf16.gmra.mrb[0].mxu0 %v99
  %v246 = vpop.f32.mrb[0].mxu0
  %v247 = vadd.f32 %v58, %v246
  %v248 = vpop.f32.mrb[0].mxu0
  %v249 = vpop.f32.mrb[0].mxu0
  %v250 = vadd.f32 %v58, %v249
  %v251 = vpop.f32.mrb[0].mxu0
  %252 = vdwg.mxu0
  %vm253 = vcmask 130048
  %v254 = vsel %vm253, %v191, 0.0
  %v255 = vsel %vm253, %v194, 0.0
  %v256 = vadd.f32 %v254, %v255
  %v257 = vsel %vm253, %v199, 0.0
  %v258 = vadd.f32 %v256, %v257
  %v259 = vsel %vm253, %v202, 0.0
  %v260 = vadd.f32 %v258, %v259
  %v261 = vsel %vm253, %v207, 0.0
  %v262 = vadd.f32 %v260, %v261
  %v263 = vsel %vm253, %v210, 0.0
  %v264 = vadd.f32 %v262, %v263
  %v265 = vsel %vm253, %v215, 0.0
  %v266 = vadd.f32 %v264, %v265
  %v267 = vsel %vm253, %v218, 0.0
  %v268 = vadd.f32 %v266, %v267
  %v269 = vsel %vm253, %v223, 0.0
  %v270 = vadd.f32 %v268, %v269
  %v271 = vsel %vm253, %v226, 0.0
  %v272 = vadd.f32 %v270, %v271
  %v273 = vsel %vm253, %v231, 0.0
  %v274 = vadd.f32 %v272, %v273
  %v275 = vsel %vm253, %v234, 0.0
  %v276 = vadd.f32 %v274, %v275
  %v277 = vsel %vm253, %v239, 0.0
  %v278 = vadd.f32 %v276, %v277
  %v279 = vsel %vm253, %v242, 0.0
  %v280 = vadd.f32 %v278, %v279
  %v281 = vsel %vm253, %v247, 0.0
  %v282 = vadd.f32 %v280, %v281
  %v283 = vsel %vm253, %v250, 0.0
  %v284 = vadd.f32 %v282, %v283
  %v285 = vrot.slane %v284, 4
  %v286 = vadd.f32 %v284, %v285
  %v287 = vrot.slane %v286, 2
  %v288 = vadd.f32 %v286, %v287
  %v289 = vrot.slane %v288, 1
  %v290 = vadd.f32 %v288, %v289
  %v291 = vmul.f32 %v290, 0.0078125
  %v292 = vsub.f32 %v191, %v291
  %v293 = vsub.f32 %v194, %v291
  %v294 = vsub.f32 %v199, %v291
  %v295 = vsub.f32 %v202, %v291
  %v296 = vsub.f32 %v207, %v291
  %v297 = vsub.f32 %v210, %v291
  %v298 = vsub.f32 %v215, %v291
  %v299 = vsub.f32 %v218, %v291
  %v300 = vsub.f32 %v223, %v291
  %v301 = vsub.f32 %v226, %v291
  %v302 = vsub.f32 %v231, %v291
  %v303 = vsub.f32 %v234, %v291
  %v304 = vsub.f32 %v239, %v291
  %v305 = vsub.f32 %v242, %v291
  %v306 = vsub.f32 %v247, %v291
  %v307 = vsub.f32 %v250, %v291
  %v308 = vmul.f32 %v292, %v292
  %v309 = vmul.f32 %v293, %v293
  %v310 = vmul.f32 %v294, %v294
  %v311 = vmul.f32 %v295, %v295
  %v312 = vmul.f32 %v296, %v296
  %v313 = vmul.f32 %v297, %v297
  %v314 = vmul.f32 %v298, %v298
  %v315 = vmul.f32 %v299, %v299
  %v316 = vmul.f32 %v300, %v300
  %v317 = vmul.f32 %v301, %v301
  %v318 = vmul.f32 %v302, %v302
  %v319 = vmul.f32 %v303, %v303
  %v320 = vmul.f32 %v304, %v304
  %v321 = vmul.f32 %v305, %v305
  %v322 = vmul.f32 %v306, %v306
  %v323 = vmul.f32 %v307, %v307
  %v324 = vsel %vm253, %v308, 0.0
  %v325 = vsel %vm253, %v309, 0.0
  %v326 = vadd.f32 %v324, %v325
  %v327 = vsel %vm253, %v310, 0.0
  %v328 = vadd.f32 %v326, %v327
  %v329 = vsel %vm253, %v311, 0.0
  %v330 = vadd.f32 %v328, %v329
  %v331 = vsel %vm253, %v312, 0.0
  %v332 = vadd.f32 %v330, %v331
  %v333 = vsel %vm253, %v313, 0.0
  %v334 = vadd.f32 %v332, %v333
  %v335 = vsel %vm253, %v314, 0.0
  %v336 = vadd.f32 %v334, %v335
  %v337 = vsel %vm253, %v315, 0.0
  %v338 = vadd.f32 %v336, %v337
  %v339 = vsel %vm253, %v316, 0.0
  %v340 = vadd.f32 %v338, %v339
  %v341 = vsel %vm253, %v317, 0.0
  %v342 = vadd.f32 %v340, %v341
  %v343 = vsel %vm253, %v318, 0.0
  %v344 = vadd.f32 %v342, %v343
  %v345 = vsel %vm253, %v319, 0.0
  %v346 = vadd.f32 %v344, %v345
  %v347 = vsel %vm253, %v320, 0.0
  %v348 = vadd.f32 %v346, %v347
  %v349 = vsel %vm253, %v321, 0.0
  %v350 = vadd.f32 %v348, %v349
  %v351 = vsel %vm253, %v322, 0.0
  %v352 = vadd.f32 %v350, %v351
  %v353 = vsel %vm253, %v323, 0.0
  %v354 = vadd.f32 %v352, %v353
  %v355 = vrot.slane %v354, 4
  %v356 = vadd.f32 %v354, %v355
  %v357 = vrot.slane %v356, 2
  %v358 = vadd.f32 %v356, %v357
  %v359 = vrot.slane %v358, 1
  %v360 = vadd.f32 %v358, %v359
  %v361 = vmul.f32 %v360, 0.0078125
  %v362 = vld [vmem:[%s3] sm:$0x1]
  %v363 = vadd.f32 %v361, 1e-05
  %v364 = vrsqrt.pop %v363
  %v365 = vmul.f32 %v362, %v364
  %v367 = vlaneseq
  %v368 = vshrl.u32 %v367, 7
  %v369 = vsub.s32 0, %v368
  %v370 = vrot.slane %v365, %v369
  %v372 = vmul.f32 %v292, %v370
  %v373 = vmul.f32 %v293, %v370
  %v374 = vmul.f32 %v294, %v370
  %v375 = vmul.f32 %v295, %v370
  %v376 = vmul.f32 %v296, %v370
  %v377 = vmul.f32 %v297, %v370
  %v378 = vmul.f32 %v298, %v370
  %v379 = vmul.f32 %v299, %v370
  %v380 = vmul.f32 %v300, %v370
  %v381 = vmul.f32 %v301, %v370
  %v382 = vmul.f32 %v302, %v370
  %v383 = vmul.f32 %v303, %v370
  %v384 = vmul.f32 %v304, %v370
  %v385 = vmul.f32 %v305, %v370
  %v386 = vmul.f32 %v306, %v370
  %v387 = vmul.f32 %v307, %v370
  %v388 = vld [vmem:[%s4] sm:$0x1]
  %v390 = vlaneseq
  %v391 = vshrl.u32 %v390, 7
  %v392 = vsub.s32 0, %v391
  %v393 = vrot.slane %v388, %v392
  %v395 = vadd.f32 %v372, %v393
  %v396 = vadd.f32 %v373, %v393
  %v397 = vadd.f32 %v374, %v393
  %v398 = vadd.f32 %v375, %v393
  %v399 = vadd.f32 %v376, %v393
  %v400 = vadd.f32 %v377, %v393
  %v401 = vadd.f32 %v378, %v393
  %v402 = vadd.f32 %v379, %v393
  %v403 = vadd.f32 %v380, %v393
  %v404 = vadd.f32 %v381, %v393
  %v405 = vadd.f32 %v382, %v393
  %v406 = vadd.f32 %v383, %v393
  %v407 = vadd.f32 %v384, %v393
  %v408 = vadd.f32 %v385, %v393
  %v409 = vadd.f32 %v386, %v393
  %v410 = vadd.f32 %v387, %v393
  %v411 = vmul.f32 %v395, 0.2
  %v412 = vmul.f32 %v396, 0.2
  %v413 = vmul.f32 %v397, 0.2
  %v414 = vmul.f32 %v398, 0.2
  %v415 = vmul.f32 %v399, 0.2
  %v416 = vmul.f32 %v400, 0.2
  %v417 = vmul.f32 %v401, 0.2
  %v418 = vmul.f32 %v402, 0.2
  %v419 = vmul.f32 %v403, 0.2
  %v420 = vmul.f32 %v404, 0.2
  %v421 = vmul.f32 %v405, 0.2
  %v422 = vmul.f32 %v406, 0.2
  %v423 = vmul.f32 %v407, 0.2
  %v424 = vmul.f32 %v408, 0.2
  %v425 = vmul.f32 %v409, 0.2
  %v426 = vmul.f32 %v410, 0.2
  %v427 = vmax.f32 %v395, %v411
  %v428 = vmax.f32 %v396, %v412
  %v429 = vmax.f32 %v397, %v413
  %v430 = vmax.f32 %v398, %v414
  %v431 = vmax.f32 %v399, %v415
  %v432 = vmax.f32 %v400, %v416
  %v433 = vmax.f32 %v401, %v417
  %v434 = vmax.f32 %v402, %v418
  %v435 = vmax.f32 %v403, %v419
  %v436 = vmax.f32 %v404, %v420
  %v437 = vmax.f32 %v405, %v421
  %v438 = vmax.f32 %v406, %v422
  %v439 = vmax.f32 %v407, %v423
  %v440 = vmax.f32 %v408, %v424
  %v441 = vmax.f32 %v409, %v425
  %v442 = vmax.f32 %v410, %v426
  %v443 = vpack.c.bf16 %v428, %v427
  %v444 = vpack.c.bf16 %v430, %v429
  %v445 = vpack.c.bf16 %v432, %v431
  %v446 = vpack.c.bf16 %v434, %v433
  %v447 = vpack.c.bf16 %v436, %v435
  %v448 = vpack.c.bf16 %v438, %v437
  %v449 = vpack.c.bf16 %v440, %v439
  %v450 = vpack.c.bf16 %v442, %v441
  %v459 = vunpack.c.l.b16 %v443
  %v460 = vunpack.c.h.b16 %v443
  %v461 = vunpack.c.l.b16 %v444
  %v462 = vunpack.c.h.b16 %v444
  %v463 = vunpack.c.l.b16 %v445
  %v464 = vunpack.c.h.b16 %v445
  %v465 = vunpack.c.l.b16 %v446
  %v466 = vunpack.c.h.b16 %v446
  %v467 = vunpack.c.l.b16 %v447
  %v468 = vunpack.c.h.b16 %v447
  %v469 = vunpack.c.l.b16 %v448
  %v470 = vunpack.c.h.b16 %v448
  %v471 = vunpack.c.l.b16 %v449
  %v472 = vunpack.c.h.b16 %v449
  %v473 = vunpack.c.l.b16 %v450
  %v474 = vunpack.c.h.b16 %v450
  %v475 = vpack.c.b16 %v459, %v459
  %v476 = vpack.c.b16 %v460, %v460
  %v477 = vpack.c.b16 %v461, %v461
  %v478 = vpack.c.b16 %v462, %v462
  %v479 = vpack.c.b16 %v463, %v463
  %v480 = vpack.c.b16 %v464, %v464
  %v481 = vpack.c.b16 %v465, %v465
  %v482 = vpack.c.b16 %v466, %v466
  %v483 = vpack.c.b16 %v467, %v467
  %v484 = vpack.c.b16 %v468, %v468
  %v485 = vpack.c.b16 %v469, %v469
  %v486 = vpack.c.b16 %v470, %v470
  %v487 = vpack.c.b16 %v471, %v471
  %v488 = vpack.c.b16 %v472, %v472
  %v489 = vpack.c.b16 %v473, %v473
  %v490 = vpack.c.b16 %v474, %v474
  %vm507 = vcmask 125952
  %508 = vst.msk [vmem:[%s5] sm:$0xf] %vm507, %v475
  %509 = vst.msk [vmem:[%s5 + $0x4] sm:$0xf] %vm507, %v476
  %510 = vst.msk [vmem:[%s5 + $0x8] sm:$0xf] %vm507, %v477
  %511 = vst.msk [vmem:[%s5 + $0xc] sm:$0xf] %vm507, %v478
  %512 = vst.msk [vmem:[%s5 + $0x10] sm:$0xf] %vm507, %v479
  %513 = vst.msk [vmem:[%s5 + $0x14] sm:$0xf] %vm507, %v480
  %514 = vst.msk [vmem:[%s5 + $0x18] sm:$0xf] %vm507, %v481
  %515 = vst.msk [vmem:[%s5 + $0x1c] sm:$0xf] %vm507, %v482
  %516 = vst.msk [vmem:[%s5 + $0x20] sm:$0xf] %vm507, %v483
  %517 = vst.msk [vmem:[%s5 + $0x24] sm:$0xf] %vm507, %v484
  %518 = vst.msk [vmem:[%s5 + $0x28] sm:$0xf] %vm507, %v485
  %519 = vst.msk [vmem:[%s5 + $0x2c] sm:$0xf] %vm507, %v486
  %520 = vst.msk [vmem:[%s5 + $0x30] sm:$0xf] %vm507, %v487
  %521 = vst.msk [vmem:[%s5 + $0x34] sm:$0xf] %vm507, %v488
  %522 = vst.msk [vmem:[%s5 + $0x38] sm:$0xf] %vm507, %v489
  %523 = vst.msk [vmem:[%s5 + $0x3c] sm:$0xf] %vm507, %v490
  // Predicated region
  $region22: #{discriminator_forward.4} parent=0 // pred_check
    _
  $region23: #{discriminator_forward.4} parent=0 // pred_check_branch
    %525 = sbr.rel (0) target = $region25
  $region24: #{discriminator_forward.4} parent=0 // pred_region
    _
  $region25: #{discriminator_forward.4} parent=0 // pred_fallthru
    _
  // Predicated region
  $region26: #{discriminator_forward.4} parent=0 // pred_check
    _
  $region27: #{discriminator_forward.4} parent=0 // pred_check_branch
    %527 = sbr.rel (0) target = $region29
  $region28: #{discriminator_forward.4} parent=0 // pred_region
    _
  $region29: #{discriminator_forward.4} parent=0 // pred_fallthru
    _

// kernel: discriminator_forward.5
$region0: #{discriminator_forward.5}
  #allocation0 [shape = 'u32[]', space=smem, size = 0x4, offset = 0x4, fixed_abs, tag = 'smem constant byte address 0x4 - core index']
  #allocation1 [shape = 'u32[144,128]{1,0:T(1,128)}', space=vmem, size = 0x12000, scoped, tag = 'internal scratch']
  %s0 = inlined_call_operand.vmem [shape: bf16[32,256], index: 0, kind: input, shape index: {}]
  %s1 = inlined_call_operand.vmem [shape: bf16[256,32], index: 1, kind: input, shape index: {}]
  %s2 = inlined_call_operand.vmem [shape: f32[1,32], index: 2, kind: input, shape index: {}]
  %s3 = inlined_call_operand.vmem [shape: f32[1,32], index: 3, kind: input, shape index: {}]
  %s4 = inlined_call_operand.vmem [shape: f32[1,32], index: 4, kind: input, shape index: {}]
  %s5 = inlined_call_operand.vmem [shape: bf16[32,32], index: 5, kind: output, shape index: {}]
  %s6 = sld [smem:[#allocation0]]
  $region30: #{discriminator_forward.5} parent=0
    _
  %s8 = ssub.s32 1, %s6
  %s9 = scalar_select 0, %s8, %s6
  // Predicated region
  $region2: #{discriminator_forward.5} parent=0 // pred_check
    _
  $region3: #{discriminator_forward.5} parent=0 // pred_check_branch
    %11 = sbr.rel (0) target = $region5
  $region4: #{discriminator_forward.5} parent=0 // pred_region
    _
  $region5: #{discriminator_forward.5} parent=0 // pred_fallthru
    _
  // Predicated region
  $region6: #{discriminator_forward.5} parent=0 // pred_check
    _
  $region7: #{discriminator_forward.5} parent=0 // pred_check_branch
    %13 = sbr.rel (0) target = $region9
  $region8: #{discriminator_forward.5} parent=0 // pred_region
    _
  $region9: #{discriminator_forward.5} parent=0 // pred_fallthru
    _
  // Predicated region
  $region10: #{discriminator_forward.5} parent=0 // pred_check
    _
  $region11: #{discriminator_forward.5} parent=0 // pred_check_branch
    %15 = sbr.rel (0) target = $region13
  $region12: #{discriminator_forward.5} parent=0 // pred_region
    _
  $region13: #{discriminator_forward.5} parent=0 // pred_fallthru
    _
  // Predicated region
  $region14: #{discriminator_forward.5} parent=0 // pred_check
    _
  $region15: #{discriminator_forward.5} parent=0 // pred_check_branch
    %17 = sbr.rel (0) target = $region17
  $region16: #{discriminator_forward.5} parent=0 // pred_region
    _
  $region17: #{discriminator_forward.5} parent=0 // pred_fallthru
    _
  // Predicated region
  $region18: #{discriminator_forward.5} parent=0 // pred_check
    _
  $region19: #{discriminator_forward.5} parent=0 // pred_check_branch
    %19 = sbr.rel (0) target = $region21
  $region20: #{discriminator_forward.5} parent=0 // pred_region
    _
  $region21: #{discriminator_forward.5} parent=0 // pred_fallthru
    _
  %v21 = vld [vmem:[%s0] sm:$0xff]
  %v22 = vld [vmem:[%s0 + $0x8] sm:$0xff]
  %v23 = vld [vmem:[%s0 + $0x10] sm:$0xff]
  %v24 = vld [vmem:[%s0 + $0x18] sm:$0xff]
  %v25 = vld [vmem:[%s1] sm:$0xf]
  %v26 = vld [vmem:[%s1 + $0x4] sm:$0xf]
  %v27 = vld [vmem:[%s1 + $0x8] sm:$0xf]
  %v28 = vld [vmem:[%s1 + $0xc] sm:$0xf]
  %v29 = vld [vmem:[%s1 + $0x10] sm:$0xf]
  %v30 = vld [vmem:[%s1 + $0x14] sm:$0xf]
  %v31 = vld [vmem:[%s1 + $0x18] sm:$0xf]
  %v32 = vld [vmem:[%s1 + $0x1c] sm:$0xf]
  %v33 = vld [vmem:[%s1 + $0x20] sm:$0xf]
  %v34 = vld [vmem:[%s1 + $0x24] sm:$0xf]
  %v35 = vld [vmem:[%s1 + $0x28] sm:$0xf]
  %v36 = vld [vmem:[%s1 + $0x2c] sm:$0xf]
  %v37 = vld [vmem:[%s1 + $0x30] sm:$0xf]
  %v38 = vld [vmem:[%s1 + $0x34] sm:$0xf]
  %v39 = vld [vmem:[%s1 + $0x38] sm:$0xf]
  %v40 = vld [vmem:[%s1 + $0x3c] sm:$0xf]
  %v41 = vld [vmem:[%s1 + $0x40] sm:$0xf]
  %v42 = vld [vmem:[%s1 + $0x44] sm:$0xf]
  %v43 = vld [vmem:[%s1 + $0x48] sm:$0xf]
  %v44 = vld [vmem:[%s1 + $0x4c] sm:$0xf]
  %v45 = vld [vmem:[%s1 + $0x50] sm:$0xf]
  %v46 = vld [vmem:[%s1 + $0x54] sm:$0xf]
  %v47 = vld [vmem:[%s1 + $0x58] sm:$0xf]
  %v48 = vld [vmem:[%s1 + $0x5c] sm:$0xf]
  %v49 = vld [vmem:[%s1 + $0x60] sm:$0xf]
  %v50 = vld [vmem:[%s1 + $0x64] sm:$0xf]
  %v51 = vld [vmem:[%s1 + $0x68] sm:$0xf]
  %v52 = vld [vmem:[%s1 + $0x6c] sm:$0xf]
  %v53 = vld [vmem:[%s1 + $0x70] sm:$0xf]
  %v54 = vld [vmem:[%s1 + $0x74] sm:$0xf]
  %v55 = vld [vmem:[%s1 + $0x78] sm:$0xf]
  %v56 = vld [vmem:[%s1 + $0x7c] sm:$0xf]
  %v57 = vld [vmem:[%s2] sm:$0x1]
  %v59 = vlaneseq
  %v60 = vshrl.u32 %v59, 7
  %v61 = vsub.s32 0, %v60
  %v62 = vrot.slane %v57, %v61
  %v68 = vunpack.c.l.b16 %v21
  %v69 = vunpack.c.h.b16 %v21
  %v70 = vunpack.c.l.b16 %v22
  %v71 = vunpack.c.h.b16 %v22
  %v72 = vunpack.c.l.b16 %v23
  %v73 = vunpack.c.h.b16 %v23
  %v74 = vunpack.c.l.b16 %v24
  %v75 = vunpack.c.h.b16 %v24
  %v76 = vpack.c.b16 %v70, %v68
  %v77 = vpack.c.b16 %v71, %v69
  %v78 = vpack.c.b16 %v74, %v72
  %v79 = vpack.c.b16 %v75, %v73
  %v116 = vunpack.c.l.b16 %v25
  %v117 = vunpack.c.l.b16 %v26
  %v118 = vunpack.c.l.b16 %v27
  %v119 = vunpack.c.l.b16 %v28
  %v120 = vunpack.c.l.b16 %v29
  %v121 = vunpack.c.l.b16 %v30
  %v122 = vunpack.c.l.b16 %v31
  %v123 = vunpack.c.l.b16 %v32
  %v124 = vunpack.c.l.b16 %v33
  %v125 = vunpack.c.l.b16 %v34
  %v126 = vunpack.c.l.b16 %v35
  %v127 = vunpack.c.l.b16 %v36
  %v128 = vunpack.c.l.b16 %v37
  %v129 = vunpack.c.l.b16 %v38
  %v130 = vunpack.c.l.b16 %v39
  %v131 = vunpack.c.l.b16 %v40
  %v132 = vunpack.c.l.b16 %v41
  %v133 = vunpack.c.l.b16 %v42
  %v134 = vunpack.c.l.b16 %v43
  %v135 = vunpack.c.l.b16 %v44
  %v136 = vunpack.c.l.b16 %v45
  %v137 = vunpack.c.l.b16 %v46
  %v138 = vunpack.c.l.b16 %v47
  %v139 = vunpack.c.l.b16 %v48
  %v140 = vunpack.c.l.b16 %v49
  %v141 = vunpack.c.l.b16 %v50
  %v142 = vunpack.c.l.b16 %v51
  %v143 = vunpack.c.l.b16 %v52
  %v144 = vunpack.c.l.b16 %v53
  %v145 = vunpack.c.l.b16 %v54
  %v146 = vunpack.c.l.b16 %v55
  %v147 = vunpack.c.l.b16 %v56
  %v148 = vpack.c.b16 %v117, %v116
  %v149 = vpack.c.b16 %v119, %v118
  %v150 = vpack.c.b16 %v121, %v120
  %v151 = vpack.c.b16 %v123, %v122
  %v152 = vpack.c.b16 %v125, %v124
  %v153 = vpack.c.b16 %v127, %v126
  %v154 = vpack.c.b16 %v129, %v128
  %v155 = vpack.c.b16 %v131, %v130
  %v156 = vpack.c.b16 %v133, %v132
  %v157 = vpack.c.b16 %v135, %v134
  %v158 = vpack.c.b16 %v137, %v136
  %v159 = vpack.c.b16 %v139, %v138
  %v160 = vpack.c.b16 %v141, %v140
  %v161 = vpack.c.b16 %v143, %v142
  %v162 = vpack.c.b16 %v145, %v144
  %v163 = vpack.c.b16 %v147, %v146
  %180 = vmatprep.subr.bf16.mxu0 0
  %181 = vmatpush1.bf16.msra.mxu0 %v148
  %182 = vmatprep.subr.bf16.mxu0 0
  %183 = vmatpush1.bf16.msra.mxu0 %v149
  %184 = vmatprep.subr.bf16.mxu0 0
  %185 = vmatpush1.bf16.msra.mxu0 %v150
  %186 = vmatprep.subr.bf16.mxu0 0
  %187 = vmatpush1.bf16.msra.mxu0 %v151
  %188 = vmatprep.subr.bf16.mxu0 0
  %189 = vmatpush1.bf16.msra.mxu0 %v152
  %190 = vmatprep.subr.bf16.mxu0 0
  %191 = vmatpush1.bf16.msra.mxu0 %v153
  %192 = vmatprep.subr.bf16.mxu0 0
  %193 = vmatpush1.bf16.msra.mxu0 %v154
  %194 = vmatprep.subr.bf16.mxu0 0
  %195 = vmatpush1.bf16.msra.mxu0 %v155
  %196 = vmatprep.subr.bf16.mxu0 0
  %197 = vmatpush1.bf16.msra.mxu0 %v156
  %198 = vmatprep.subr.bf16.mxu0 0
  %199 = vmatpush1.bf16.msra.mxu0 %v157
  %200 = vmatprep.subr.bf16.mxu0 0
  %201 = vmatpush1.bf16.msra.mxu0 %v158
  %202 = vmatprep.subr.bf16.mxu0 0
  %203 = vmatpush1.bf16.msra.mxu0 %v159
  %204 = vmatprep.subr.bf16.mxu0 0
  %205 = vmatpush1.bf16.msra.mxu0 %v160
  %206 = vmatprep.subr.bf16.mxu0 0
  %207 = vmatpush1.bf16.msra.mxu0 %v161
  %208 = vmatprep.subr.bf16.mxu0 0
  %209 = vmatpush1.bf16.msra.mxu0 %v162
  %210 = vmatprep.subr.bf16.mxu0 0
  %211 = vmatpush1.bf16.msra.mxu0 %v163
  %212 = vmatprep.mubr.bf16.mxu0 %v77
  %213 = vmatmul.mubr.bf16.gmra.mrb[0].mxu0 %v76
  %v214 = vpop.f32.mrb[0].mxu0
  %v215 = vadd.f32 %v62, %v214
  %v216 = vpop.f32.mrb[0].mxu0
  %v217 = vpop.f32.mrb[0].mxu0
  %v218 = vadd.f32 %v62, %v217
  %v219 = vpop.f32.mrb[0].mxu0
  %220 = vmatprep.mubr.bf16.mxu0 %v79
  %221 = vmatmul.mubr.bf16.gmra.mrb[0].mxu0 %v78
  %v222 = vpop.f32.mrb[0].mxu0
  %v223 = vadd.f32 %v62, %v222
  %v224 = vpop.f32.mrb[0].mxu0
  %v225 = vpop.f32.mrb[0].mxu0
  %v226 = vadd.f32 %v62, %v225
  %v227 = vpop.f32.mrb[0].mxu0
  %228 = vdwg.mxu0
  %vm229 = vcmask 261120
  %v230 = vsel %vm229, %v215, 0.0
  %v231 = vsel %vm229, %v218, 0.0
  %v232 = vadd.f32 %v230, %v231
  %v233 = vsel %vm229, %v223, 0.0
  %v234 = vadd.f32 %v232, %v233
  %v235 = vsel %vm229, %v226, 0.0
  %v236 = vadd.f32 %v234, %v235
  %v237 = vrot.slane %v236, 4
  %v238 = vadd.f32 %v236, %v237
  %v239 = vrot.slane %v238, 2
  %v240 = vadd.f32 %v238, %v239
  %v241 = vrot.slane %v240, 1
  %v242 = vadd.f32 %v240, %v241
  %v243 = vmul.f32 %v242, 0.03125
  %v244 = vsub.f32 %v215, %v243
  %v245 = vsub.f32 %v218, %v243
  %v246 = vsub.f32 %v223, %v243
  %v247 = vsub.f32 %v226, %v243
  %v248 = vmul.f32 %v244, %v244
  %v249 = vmul.f32 %v245, %v245
  %v250 = vmul.f32 %v246, %v246
  %v251 = vmul.f32 %v247, %v247
  %v252 = vsel %vm229, %v248, 0.0
  %v253 = vsel %vm229, %v249, 0.0
  %v254 = vadd.f32 %v252, %v253
  %v255 = vsel %vm229, %v250, 0.0
  %v256 = vadd.f32 %v254, %v255
  %v257 = vsel %vm229, %v251, 0.0
  %v258 = vadd.f32 %v256, %v257
  %v259 = vrot.slane %v258, 4
  %v260 = vadd.f32 %v258, %v259
  %v261 = vrot.slane %v260, 2
  %v262 = vadd.f32 %v260, %v261
  %v263 = vrot.slane %v262, 1
  %v264 = vadd.f32 %v262, %v263
  %v265 = vmul.f32 %v264, 0.03125
  %v266 = vld [vmem:[%s3] sm:$0x1]
  %v267 = vadd.f32 %v265, 1e-05
  %v268 = vrsqrt.pop %v267
  %v269 = vmul.f32 %v266, %v268
  %v271 = vlaneseq
  %v272 = vshrl.u32 %v271, 7
  %v273 = vsub.s32 0, %v272
  %v274 = vrot.slane %v269, %v273
  %v276 = vmul.f32 %v244, %v274
  %v277 = vmul.f32 %v245, %v274
  %v278 = vmul.f32 %v246, %v274
  %v279 = vmul.f32 %v247, %v274
  %v280 = vld [vmem:[%s4] sm:$0x1]
  %v282 = vlaneseq
  %v283 = vshrl.u32 %v282, 7
  %v284 = vsub.s32 0, %v283
  %v285 = vrot.slane %v280, %v284
  %v287 = vadd.f32 %v276, %v285
  %v288 = vadd.f32 %v277, %v285
  %v289 = vadd.f32 %v278, %v285
  %v290 = vadd.f32 %v279, %v285
  %v291 = vmul.f32 %v287, 0.2
  %v292 = vmul.f32 %v288, 0.2
  %v293 = vmul.f32 %v289, 0.2
  %v294 = vmul.f32 %v290, 0.2
  %v295 = vmax.f32 %v287, %v291
  %v296 = vmax.f32 %v288, %v292
  %v297 = vmax.f32 %v289, %v293
  %v298 = vmax.f32 %v290, %v294
  %v299 = vpack.c.bf16 %v296, %v295
  %v300 = vpack.c.bf16 %v298, %v297
  %v303 = vunpack.c.l.b16 %v299
  %v304 = vunpack.c.h.b16 %v299
  %v305 = vunpack.c.l.b16 %v300
  %v306 = vunpack.c.h.b16 %v300
  %v307 = vpack.c.b16 %v303, %v303
  %v308 = vpack.c.b16 %v304, %v304
  %v309 = vpack.c.b16 %v305, %v305
  %v310 = vpack.c.b16 %v306, %v306
  %vm315 = vcmask 257024
  %316 = vst.msk [vmem:[%s5] sm:$0xf] %vm315, %v307
  %317 = vst.msk [vmem:[%s5 + $0x4] sm:$0xf] %vm315, %v308
  %318 = vst.msk [vmem:[%s5 + $0x8] sm:$0xf] %vm315, %v309
  %319 = vst.msk [vmem:[%s5 + $0xc] sm:$0xf] %vm315, %v310
  // Predicated region
  $region22: #{discriminator_forward.5} parent=0 // pred_check
    _
  $region23: #{discriminator_forward.5} parent=0 // pred_check_branch
    %321 = sbr.rel (0) target = $region25
  $region24: #{discriminator_forward.5} parent=0 // pred_region
    _
  $region25: #{discriminator_forward.5} parent=0 // pred_fallthru
    _
  // Predicated region
  $region26: #{discriminator_forward.5} parent=0 // pred_check
    _
  $region27: #{discriminator_forward.5} parent=0 // pred_check_branch
    %323 = sbr.rel (0) target = $region29
  $region28: #{discriminator_forward.5} parent=0 // pred_region
    _
  $region29: #{discriminator_forward.5} parent=0 // pred_fallthru
    _

// kernel: discriminator_forward.6
$region0: #{discriminator_forward.6}
  #allocation0 [shape = 'u32[]', space=smem, size = 0x4, offset = 0x4, fixed_abs, tag = 'smem constant byte address 0x4 - core index']
  #allocation1 [shape = 'u32[144,128]{1,0:T(1,128)}', space=vmem, size = 0x12000, scoped, tag = 'internal scratch']
  %s0 = inlined_call_operand.vmem [shape: bf16[8,512], index: 0, kind: input, shape index: {}]
  %s1 = inlined_call_operand.vmem [shape: bf16[512,32], index: 1, kind: input, shape index: {}]
  %s2 = inlined_call_operand.vmem [shape: f32[1,32], index: 2, kind: input, shape index: {}]
  %s3 = inlined_call_operand.vmem [shape: f32[1,32], index: 3, kind: input, shape index: {}]
  %s4 = inlined_call_operand.vmem [shape: f32[1,32], index: 4, kind: input, shape index: {}]
  %s5 = inlined_call_operand.vmem [shape: bf16[8,32], index: 5, kind: output, shape index: {}]
  %s6 = sld [smem:[#allocation0]]
  $region30: #{discriminator_forward.6} parent=0
    _
  %s8 = ssub.s32 1, %s6
  %s9 = scalar_select 0, %s8, %s6
  // Predicated region
  $region2: #{discriminator_forward.6} parent=0 // pred_check
    _
  $region3: #{discriminator_forward.6} parent=0 // pred_check_branch
    %11 = sbr.rel (0) target = $region5
  $region4: #{discriminator_forward.6} parent=0 // pred_region
    _
  $region5: #{discriminator_forward.6} parent=0 // pred_fallthru
    _
  // Predicated region
  $region6: #{discriminator_forward.6} parent=0 // pred_check
    _
  $region7: #{discriminator_forward.6} parent=0 // pred_check_branch
    %13 = sbr.rel (0) target = $region9
  $region8: #{discriminator_forward.6} parent=0 // pred_region
    _
  $region9: #{discriminator_forward.6} parent=0 // pred_fallthru
    _
  // Predicated region
  $region10: #{discriminator_forward.6} parent=0 // pred_check
    _
  $region11: #{discriminator_forward.6} parent=0 // pred_check_branch
    %15 = sbr.rel (0) target = $region13
  $region12: #{discriminator_forward.6} parent=0 // pred_region
    _
  $region13: #{discriminator_forward.6} parent=0 // pred_fallthru
    _
  // Predicated region
  $region14: #{discriminator_forward.6} parent=0 // pred_check
    _
  $region15: #{discriminator_forward.6} parent=0 // pred_check_branch
    %17 = sbr.rel (0) target = $region17
  $region16: #{discriminator_forward.6} parent=0 // pred_region
    _
  $region17: #{discriminator_forward.6} parent=0 // pred_fallthru
    _
  // Predicated region
  $region18: #{discriminator_forward.6} parent=0 // pred_check
    _
  $region19: #{discriminator_forward.6} parent=0 // pred_check_branch
    %19 = sbr.rel (0) target = $region21
  $region20: #{discriminator_forward.6} parent=0 // pred_region
    _
  $region21: #{discriminator_forward.6} parent=0 // pred_fallthru
    _
  %v21 = vld [vmem:[%s0] sm:$0xff]
  %v22 = vld [vmem:[%s0 + $0x8] sm:$0xff]
  %v23 = vld [vmem:[%s1] sm:$0xf]
  %v24 = vld [vmem:[%s1 + $0x4] sm:$0xf]
  %v25 = vld [vmem:[%s1 + $0x8] sm:$0xf]
  %v26 = vld [vmem:[%s1 + $0xc] sm:$0xf]
  %v27 = vld [vmem:[%s1 + $0x10] sm:$0xf]
  %v28 = vld [vmem:[%s1 + $0x14] sm:$0xf]
  %v29 = vld [vmem:[%s1 + $0x18] sm:$0xf]
  %v30 = vld [vmem:[%s1 + $0x1c] sm:$0xf]
  %v31 = vld [vmem:[%s1 + $0x20] sm:$0xf]
  %v32 = vld [vmem:[%s1 + $0x24] sm:$0xf]
  %v33 = vld [vmem:[%s1 + $0x28] sm:$0xf]
  %v34 = vld [vmem:[%s1 + $0x2c] sm:$0xf]
  %v35 = vld [vmem:[%s1 + $0x30] sm:$0xf]
  %v36 = vld [vmem:[%s1 + $0x34] sm:$0xf]
  %v37 = vld [vmem:[%s1 + $0x38] sm:$0xf]
  %v38 = vld [vmem:[%s1 + $0x3c] sm:$0xf]
  %v39 = vld [vmem:[%s1 + $0x40] sm:$0xf]
  %v40 = vld [vmem:[%s1 + $0x44] sm:$0xf]
  %v41 = vld [vmem:[%s1 + $0x48] sm:$0xf]
  %v42 = vld [vmem:[%s1 + $0x4c] sm:$0xf]
  %v43 = vld [vmem:[%s1 + $0x50] sm:$0xf]
  %v44 = vld [vmem:[%s1 + $0x54] sm:$0xf]
  %v45 = vld [vmem:[%s1 + $0x58] sm:$0xf]
  %v46 = vld [vmem:[%s1 + $0x5c] sm:$0xf]
  %v47 = vld [vmem:[%s1 + $0x60] sm:$0xf]
  %v48 = vld [vmem:[%s1 + $0x64] sm:$0xf]
  %v49 = vld [vmem:[%s1 + $0x68] sm:$0xf]
  %v50 = vld [vmem:[%s1 + $0x6c] sm:$0xf]
  %v51 = vld [vmem:[%s1 + $0x70] sm:$0xf]
  %v52 = vld [vmem:[%s1 + $0x74] sm:$0xf]
  %v53 = vld [vmem:[%s1 + $0x78] sm:$0xf]
  %v54 = vld [vmem:[%s1 + $0x7c] sm:$0xf]
  %v55 = vld [vmem:[%s1 + $0x80] sm:$0xf]
  %v56 = vld [vmem:[%s1 + $0x84] sm:$0xf]
  %v57 = vld [vmem:[%s1 + $0x88] sm:$0xf]
  %v58 = vld [vmem:[%s1 + $0x8c] sm:$0xf]
  %v59 = vld [vmem:[%s1 + $0x90] sm:$0xf]
  %v60 = vld [vmem:[%s1 + $0x94] sm:$0xf]
  %v61 = vld [vmem:[%s1 + $0x98] sm:$0xf]
  %v62 = vld [vmem:[%s1 + $0x9c] sm:$0xf]
  %v63 = vld [vmem:[%s1 + $0xa0] sm:$0xf]
  %v64 = vld [vmem:[%s1 + $0xa4] sm:$0xf]
  %v65 = vld [vmem:[%s1 + $0xa8] sm:$0xf]
  %v66 = vld [vmem:[%s1 + $0xac] sm:$0xf]
  %v67 = vld [vmem:[%s1 + $0xb0] sm:$0xf]
  %v68 = vld [vmem:[%s1 + $0xb4] sm:$0xf]
  %v69 = vld [vmem:[%s1 + $0xb8] sm:$0xf]
  %v70 = vld [vmem:[%s1 + $0xbc] sm:$0xf]
  %v71 = vld [vmem:[%s1 + $0xc0] sm:$0xf]
  %v72 = vld [vmem:[%s1 + $0xc4] sm:$0xf]
  %v73 = vld [vmem:[%s1 + $0xc8] sm:$0xf]
  %v74 = vld [vmem:[%s1 + $0xcc] sm:$0xf]
  %v75 = vld [vmem:[%s1 + $0xd0] sm:$0xf]
  %v76 = vld [vmem:[%s1 + $0xd4] sm:$0xf]
  %v77 = vld [vmem:[%s1 + $0xd8] sm:$0xf]
  %v78 = vld [vmem:[%s1 + $0xdc] sm:$0xf]
  %v79 = vld [vmem:[%s1 + $0xe0] sm:$0xf]
  %v80 = vld [vmem:[%s1 + $0xe4] sm:$0xf]
  %v81 = vld [vmem:[%s1 + $0xe8] sm:$0xf]
  %v82 = vld [vmem:[%s1 + $0xec] sm:$0xf]
  %v83 = vld [vmem:[%s1 + $0xf0] sm:$0xf]
  %v84 = vld [vmem:[%s1 + $0xf4] sm:$0xf]
  %v85 = vld [vmem:[%s1 + $0xf8] sm:$0xf]
  %v86 = vld [vmem:[%s1 + $0xfc] sm:$0xf]
  %v87 = vld [vmem:[%s2] sm:$0x1]
  %v89 = vlaneseq
  %v90 = vshrl.u32 %v89, 7
  %v91 = vsub.s32 0, %v90
  %v92 = vrot.slane %v87, %v91
  %v96 = vunpack.c.l.b16 %v21
  %v97 = vunpack.c.h.b16 %v21
  %v98 = vunpack.c.l.b16 %v22
  %v99 = vunpack.c.h.b16 %v22
  %v100 = vpack.c.b16 %v96, %v96
  %v101 = vpack.c.b16 %v97, %v97
  %v102 = vpack.c.b16 %v98, %v98
  %v103 = vpack.c.b16 %v99, %v99
  %v172 = vunpack.c.l.b16 %v23
  %v173 = vunpack.c.l.b16 %v24
  %v174 = vunpack.c.l.b16 %v25
  %v175 = vunpack.c.l.b16 %v26
  %v176 = vunpack.c.l.b16 %v27
  %v177 = vunpack.c.l.b16 %v28
  %v178 = vunpack.c.l.b16 %v29
  %v179 = vunpack.c.l.b16 %v30
  %v180 = vunpack.c.l.b16 %v31
  %v181 = vunpack.c.l.b16 %v32
  %v182 = vunpack.c.l.b16 %v33
  %v183 = vunpack.c.l.b16 %v34
  %v184 = vunpack.c.l.b16 %v35
  %v185 = vunpack.c.l.b16 %v36
  %v186 = vunpack.c.l.b16 %v37
  %v187 = vunpack.c.l.b16 %v38
  %v188 = vunpack.c.l.b16 %v39
  %v189 = vunpack.c.l.b16 %v40
  %v190 = vunpack.c.l.b16 %v41
  %v191 = vunpack.c.l.b16 %v42
  %v192 = vunpack.c.l.b16 %v43
  %v193 = vunpack.c.l.b16 %v44
  %v194 = vunpack.c.l.b16 %v45
  %v195 = vunpack.c.l.b16 %v46
  %v196 = vunpack.c.l.b16 %v47
  %v197 = vunpack.c.l.b16 %v48
  %v198 = vunpack.c.l.b16 %v49
  %v199 = vunpack.c.l.b16 %v50
  %v200 = vunpack.c.l.b16 %v51
  %v201 = vunpack.c.l.b16 %v52
  %v202 = vunpack.c.l.b16 %v53
  %v203 = vunpack.c.l.b16 %v54
  %v204 = vunpack.c.l.b16 %v55
  %v205 = vunpack.c.l.b16 %v56
  %v206 = vunpack.c.l.b16 %v57
  %v207 = vunpack.c.l.b16 %v58
  %v208 = vunpack.c.l.b16 %v59
  %v209 = vunpack.c.l.b16 %v60
  %v210 = vunpack.c.l.b16 %v61
  %v211 = vunpack.c.l.b16 %v62
  %v212 = vunpack.c.l.b16 %v63
  %v213 = vunpack.c.l.b16 %v64
  %v214 = vunpack.c.l.b16 %v65
  %v215 = vunpack.c.l.b16 %v66
  %v216 = vunpack.c.l.b16 %v67
  %v217 = vunpack.c.l.b16 %v68
  %v218 = vunpack.c.l.b16 %v69
  %v219 = vunpack.c.l.b16 %v70
  %v220 = vunpack.c.l.b16 %v71
  %v221 = vunpack.c.l.b16 %v72
  %v222 = vunpack.c.l.b16 %v73
  %v223 = vunpack.c.l.b16 %v74
  %v224 = vunpack.c.l.b16 %v75
  %v225 = vunpack.c.l.b16 %v76
  %v226 = vunpack.c.l.b16 %v77
  %v227 = vunpack.c.l.b16 %v78
  %v228 = vunpack.c.l.b16 %v79
  %v229 = vunpack.c.l.b16 %v80
  %v230 = vunpack.c.l.b16 %v81
  %v231 = vunpack.c.l.b16 %v82
  %v232 = vunpack.c.l.b16 %v83
  %v233 = vunpack.c.l.b16 %v84
  %v234 = vunpack.c.l.b16 %v85
  %v235 = vunpack.c.l.b16 %v86
  %v236 = vpack.c.b16 %v173, %v172
  %v237 = vpack.c.b16 %v175, %v174
  %v238 = vpack.c.b16 %v177, %v176
  %v239 = vpack.c.b16 %v179, %v178
  %v240 = vpack.c.b16 %v181, %v180
  %v241 = vpack.c.b16 %v183, %v182
  %v242 = vpack.c.b16 %v185, %v184
  %v243 = vpack.c.b16 %v187, %v186
  %v244 = vpack.c.b16 %v189, %v188
  %v245 = vpack.c.b16 %v191, %v190
  %v246 = vpack.c.b16 %v193, %v192
  %v247 = vpack.c.b16 %v195, %v194
  %v248 = vpack.c.b16 %v197, %v196
  %v249 = vpack.c.b16 %v199, %v198
  %v250 = vpack.c.b16 %v201, %v200
  %v251 = vpack.c.b16 %v203, %v202
  %v252 = vpack.c.b16 %v205, %v204
  %v253 = vpack.c.b16 %v207, %v206
  %v254 = vpack.c.b16 %v209, %v208
  %v255 = vpack.c.b16 %v211, %v210
  %v256 = vpack.c.b16 %v213, %v212
  %v257 = vpack.c.b16 %v215, %v214
  %v258 = vpack.c.b16 %v217, %v216
  %v259 = vpack.c.b16 %v219, %v218
  %v260 = vpack.c.b16 %v221, %v220
  %v261 = vpack.c.b16 %v223, %v222
  %v262 = vpack.c.b16 %v225, %v224
  %v263 = vpack.c.b16 %v227, %v226
  %v264 = vpack.c.b16 %v229, %v228
  %v265 = vpack.c.b16 %v231, %v230
  %v266 = vpack.c.b16 %v233, %v232
  %v267 = vpack.c.b16 %v235, %v234
  %300 = vmatprep.subr.bf16.mxu0 0
  %301 = vmatpush1.bf16.msra.mxu0 %v236
  %302 = vmatprep.subr.bf16.mxu0 0
  %303 = vmatpush1.bf16.msra.mxu0 %v237
  %304 = vmatprep.subr.bf16.mxu0 0
  %305 = vmatpush1.bf16.msra.mxu0 %v238
  %306 = vmatprep.subr.bf16.mxu0 0
  %307 = vmatpush1.bf16.msra.mxu0 %v239
  %308 = vmatprep.subr.bf16.mxu0 0
  %309 = vmatpush1.bf16.msra.mxu0 %v240
  %310 = vmatprep.subr.bf16.mxu0 0
  %311 = vmatpush1.bf16.msra.mxu0 %v241
  %312 = vmatprep.subr.bf16.mxu0 0
  %313 = vmatpush1.bf16.msra.mxu0 %v242
  %314 = vmatprep.subr.bf16.mxu0 0
  %315 = vmatpush1.bf16.msra.mxu0 %v243
  %316 = vmatprep.subr.bf16.mxu0 0
  %317 = vmatpush1.bf16.msra.mxu0 %v244
  %318 = vmatprep.subr.bf16.mxu0 0
  %319 = vmatpush1.bf16.msra.mxu0 %v245
  %320 = vmatprep.subr.bf16.mxu0 0
  %321 = vmatpush1.bf16.msra.mxu0 %v246
  %322 = vmatprep.subr.bf16.mxu0 0
  %323 = vmatpush1.bf16.msra.mxu0 %v247
  %324 = vmatprep.subr.bf16.mxu0 0
  %325 = vmatpush1.bf16.msra.mxu0 %v248
  %326 = vmatprep.subr.bf16.mxu0 0
  %327 = vmatpush1.bf16.msra.mxu0 %v249
  %328 = vmatprep.subr.bf16.mxu0 0
  %329 = vmatpush1.bf16.msra.mxu0 %v250
  %330 = vmatprep.subr.bf16.mxu0 0
  %331 = vmatpush1.bf16.msra.mxu0 %v251
  %332 = vmatprep.mubr.bf16.mxu0 %v101
  %333 = vmatmul.mubr.bf16.gmra.mrb[0].mxu0 %v100
  %v334 = vpop.f32.mrb[0].mxu0
  %v335 = vadd.f32 %v92, %v334
  %v336 = vpop.f32.mrb[0].mxu0
  %v337 = vpop.f32.mrb[0].mxu0
  %v338 = vpop.f32.mrb[0].mxu0
  %339 = vdwg.mxu0
  %340 = vmatprep.subr.bf16.mxu0 0
  %341 = vmatpush1.bf16.msra.mxu0 %v252
  %342 = vmatprep.subr.bf16.mxu0 0
  %343 = vmatpush1.bf16.msra.mxu0 %v253
  %344 = vmatprep.subr.bf16.mxu0 0
  %345 = vmatpush1.bf16.msra.mxu0 %v254
  %346 = vmatprep.subr.bf16.mxu0 0
  %347 = vmatpush1.bf16.msra.mxu0 %v255
  %348 = vmatprep.subr.bf16.mxu0 0
  %349 = vmatpush1.bf16.msra.mxu0 %v256
  %350 = vmatprep.subr.bf16.mxu0 0
  %351 = vmatpush1.bf16.msra.mxu0 %v257
  %352 = vmatprep.subr.bf16.mxu0 0
  %353 = vmatpush1.bf16.msra.mxu0 %v258
  %354 = vmatprep.subr.bf16.mxu0 0
  %355 = vmatpush1.bf16.msra.mxu0 %v259
  %356 = vmatprep.subr.bf16.mxu0 0
  %357 = vmatpush1.bf16.msra.mxu0 %v260
  %358 = vmatprep.subr.bf16.mxu0 0
  %359 = vmatpush1.bf16.msra.mxu0 %v261
  %360 = vmatprep.subr.bf16.mxu0 0
  %361 = vmatpush1.bf16.msra.mxu0 %v262
  %362 = vmatprep.subr.bf16.mxu0 0
  %363 = vmatpush1.bf16.msra.mxu0 %v263
  %364 = vmatprep.subr.bf16.mxu0 0
  %365 = vmatpush1.bf16.msra.mxu0 %v264
  %366 = vmatprep.subr.bf16.mxu0 0
  %367 = vmatpush1.bf16.msra.mxu0 %v265
  %368 = vmatprep.subr.bf16.mxu0 0
  %369 = vmatpush1.bf16.msra.mxu0 %v266
  %370 = vmatprep.subr.bf16.mxu0 0
  %371 = vmatpush1.bf16.msra.mxu0 %v267
  %372 = vmatprep.mubr.bf16.mxu0 %v103
  %373 = vmatmul.mubr.bf16.gmra.mrb[0].mxu0 %v102
  %v374 = vpop.f32.mrb[0].mxu0
  %v375 = vadd.f32 %v335, %v374
  %v376 = vpop.f32.mrb[0].mxu0
  %v377 = vpop.f32.mrb[0].mxu0
  %v378 = vpop.f32.mrb[0].mxu0
  %379 = vdwg.mxu0
  %vm380 = vcmask 261120
  %v381 = vsel %vm380, %v375, 0.0
  %v382 = vrot.slane %v381, 4
  %v383 = vadd.f32 %v381, %v382
  %v384 = vrot.slane %v383, 2
  %v385 = vadd.f32 %v383, %v384
  %v386 = vrot.slane %v385, 1
  %v387 = vadd.f32 %v385, %v386
  %v388 = vmul.f32 %v387, 0.125
  %v389 = vsub.f32 %v375, %v388
  %v390 = vmul.f32 %v389, %v389
  %v391 = vsel %vm380, %v390, 0.0
  %v392 = vrot.slane %v391, 4
  %v393 = vadd.f32 %v391, %v392
  %v394 = vrot.slane %v393, 2
  %v395 = vadd.f32 %v393, %v394
  %v396 = vrot.slane %v395, 1
  %v397 = vadd.f32 %v395, %v396
  %v398 = vmul.f32 %v397, 0.125
  %v399 = vld [vmem:[%s3] sm:$0x1]
  %v400 = vadd.f32 %v398, 1e-05
  %v401 = vrsqrt.pop %v400
  %v402 = vmul.f32 %v399, %v401
  %v404 = vlaneseq
  %v405 = vshrl.u32 %v404, 7
  %v406 = vsub.s32 0, %v405
  %v407 = vrot.slane %v402, %v406
  %v409 = vmul.f32 %v389, %v407
  %v410 = vld [vmem:[%s4] sm:$0x1]
  %v412 = vlaneseq
  %v413 = vshrl.u32 %v412, 7
  %v414 = vsub.s32 0, %v413
  %v415 = vrot.slane %v410, %v414
  %v417 = vadd.f32 %v409, %v415
  %v418 = vmul.f32 %v417, 0.2
  %v419 = vmax.f32 %v417, %v418
  %v420 = vpack.c.bf16 %v419, %v419
  %vm421 = vcmask 257024
  %422 = vst.msk [vmem:[%s5] sm:$0xf] %vm421, %v420
  // Predicated region
  $region22: #{discriminator_forward.6} parent=0 // pred_check
    _
  $region23: #{discriminator_forward.6} parent=0 // pred_check_branch
    %424 = sbr.rel (0) target = $region25
  $region24: #{discriminator_forward.6} parent=0 // pred_region
    _
  $region25: #{discriminator_forward.6} parent=0 // pred_fallthru
    _
  // Predicated region
  $region26: #{discriminator_forward.6} parent=0 // pred_check
    _
  $region27: #{discriminator_forward.6} parent=0 // pred_check_branch
    %426 = sbr.rel (0) target = $region29
  $region28: #{discriminator_forward.6} parent=0 // pred_region
    _
  $region29: #{discriminator_forward.6} parent=0 // pred_fallthru
    _

// kernel: discriminator_forward.7
$region0: #{discriminator_forward.7}
  #allocation0 [shape = 'u32[]', space=smem, size = 0x4, offset = 0x4, fixed_abs, tag = 'smem constant byte address 0x4 - core index']
  #allocation1 [shape = 'u32[144,128]{1,0:T(1,128)}', space=vmem, size = 0x12000, scoped, tag = 'internal scratch']
  #allocation2 [shape = 'f32[1,1]{1,0:T(1,128)S(1)}', space=vmem, size = 0x200, scoped, tag = 'scoped memory for discriminator_forward.7']
  %s0 = inlined_call_operand.vmem [shape: bf16[2,512], index: 0, kind: input, shape index: {}]
  %s1 = inlined_call_operand.vmem [shape: bf16[512,64], index: 1, kind: input, shape index: {}]
  %s2 = inlined_call_operand.vmem [shape: f32[1,64], index: 2, kind: input, shape index: {}]
  %s3 = inlined_call_operand.vmem [shape: f32[1,64], index: 3, kind: input, shape index: {}]
  %s4 = inlined_call_operand.vmem [shape: f32[1,64], index: 4, kind: input, shape index: {}]
  %s5 = inlined_call_operand.vmem [shape: f32[1,64], index: 5, kind: input, shape index: {}]
  %s6 = inlined_call_operand.<no memory space> [shape: f32[1,1], index: 6, kind: input, shape index: {}]
  %s7 = inlined_call_operand.vmem [shape: f32[2,1], index: 7, kind: output, shape index: {}]
  %s8 = sld [smem:[#allocation0]]
  $region38: #{discriminator_forward.7} parent=0
    _
  %s10 = ssub.s32 1, %s8
  %s11 = scalar_select 0, %s10, %s8
  %v12 = vstv %s6
  %13 = vst [vmem:[#allocation2] sm:$0x1] %v12
  // Predicated region
  $region2: #{discriminator_forward.7} parent=0 // pred_check
    _
  $region3: #{discriminator_forward.7} parent=0 // pred_check_branch
    %15 = sbr.rel (0) target = $region5
  $region4: #{discriminator_forward.7} parent=0 // pred_region
    _
  $region5: #{discriminator_forward.7} parent=0 // pred_fallthru
    _
  // Predicated region
  $region6: #{discriminator_forward.7} parent=0 // pred_check
    _
  $region7: #{discriminator_forward.7} parent=0 // pred_check_branch
    %17 = sbr.rel (0) target = $region9
  $region8: #{discriminator_forward.7} parent=0 // pred_region
    _
  $region9: #{discriminator_forward.7} parent=0 // pred_fallthru
    _
  // Predicated region
  $region10: #{discriminator_forward.7} parent=0 // pred_check
    _
  $region11: #{discriminator_forward.7} parent=0 // pred_check_branch
    %19 = sbr.rel (0) target = $region13
  $region12: #{discriminator_forward.7} parent=0 // pred_region
    _
  $region13: #{discriminator_forward.7} parent=0 // pred_fallthru
    _
  // Predicated region
  $region14: #{discriminator_forward.7} parent=0 // pred_check
    _
  $region15: #{discriminator_forward.7} parent=0 // pred_check_branch
    %21 = sbr.rel (0) target = $region17
  $region16: #{discriminator_forward.7} parent=0 // pred_region
    _
  $region17: #{discriminator_forward.7} parent=0 // pred_fallthru
    _
  // Predicated region
  $region18: #{discriminator_forward.7} parent=0 // pred_check
    _
  $region19: #{discriminator_forward.7} parent=0 // pred_check_branch
    %23 = sbr.rel (0) target = $region21
  $region20: #{discriminator_forward.7} parent=0 // pred_region
    _
  $region21: #{discriminator_forward.7} parent=0 // pred_fallthru
    _
  // Predicated region
  $region22: #{discriminator_forward.7} parent=0 // pred_check
    _
  $region23: #{discriminator_forward.7} parent=0 // pred_check_branch
    %25 = sbr.rel (0) target = $region25
  $region24: #{discriminator_forward.7} parent=0 // pred_region
    _
  $region25: #{discriminator_forward.7} parent=0 // pred_fallthru
    _
  // Predicated region
  $region26: #{discriminator_forward.7} parent=0 // pred_check
    _
  $region27: #{discriminator_forward.7} parent=0 // pred_check_branch
    %27 = sbr.rel (0) target = $region29
  $region28: #{discriminator_forward.7} parent=0 // pred_region
    _
  $region29: #{discriminator_forward.7} parent=0 // pred_fallthru
    _
  %v29 = vld [vmem:[%s0] sm:$0xf]
  %v30 = vld [vmem:[%s1] sm:$0xf]
  %v31 = vld [vmem:[%s1 + $0x4] sm:$0xf]
  %v32 = vld [vmem:[%s1 + $0x8] sm:$0xf]
  %v33 = vld [vmem:[%s1 + $0xc] sm:$0xf]
  %v34 = vld [vmem:[%s1 + $0x10] sm:$0xf]
  %v35 = vld [vmem:[%s1 + $0x14] sm:$0xf]
  %v36 = vld [vmem:[%s1 + $0x18] sm:$0xf]
  %v37 = vld [vmem:[%s1 + $0x1c] sm:$0xf]
  %v38 = vld [vmem:[%s1 + $0x20] sm:$0xf]
  %v39 = vld [vmem:[%s1 + $0x24] sm:$0xf]
  %v40 = vld [vmem:[%s1 + $0x28] sm:$0xf]
  %v41 = vld [vmem:[%s1 + $0x2c] sm:$0xf]
  %v42 = vld [vmem:[%s1 + $0x30] sm:$0xf]
  %v43 = vld [vmem:[%s1 + $0x34] sm:$0xf]
  %v44 = vld [vmem:[%s1 + $0x38] sm:$0xf]
  %v45 = vld [vmem:[%s1 + $0x3c] sm:$0xf]
  %v46 = vld [vmem:[%s1 + $0x40] sm:$0xf]
  %v47 = vld [vmem:[%s1 + $0x44] sm:$0xf]
  %v48 = vld [vmem:[%s1 + $0x48] sm:$0xf]
  %v49 = vld [vmem:[%s1 + $0x4c] sm:$0xf]
  %v50 = vld [vmem:[%s1 + $0x50] sm:$0xf]
  %v51 = vld [vmem:[%s1 + $0x54] sm:$0xf]
  %v52 = vld [vmem:[%s1 + $0x58] sm:$0xf]
  %v53 = vld [vmem:[%s1 + $0x5c] sm:$0xf]
  %v54 = vld [vmem:[%s1 + $0x60] sm:$0xf]
  %v55 = vld [vmem:[%s1 + $0x64] sm:$0xf]
  %v56 = vld [vmem:[%s1 + $0x68] sm:$0xf]
  %v57 = vld [vmem:[%s1 + $0x6c] sm:$0xf]
  %v58 = vld [vmem:[%s1 + $0x70] sm:$0xf]
  %v59 = vld [vmem:[%s1 + $0x74] sm:$0xf]
  %v60 = vld [vmem:[%s1 + $0x78] sm:$0xf]
  %v61 = vld [vmem:[%s1 + $0x7c] sm:$0xf]
  %v62 = vld [vmem:[%s1 + $0x80] sm:$0xf]
  %v63 = vld [vmem:[%s1 + $0x84] sm:$0xf]
  %v64 = vld [vmem:[%s1 + $0x88] sm:$0xf]
  %v65 = vld [vmem:[%s1 + $0x8c] sm:$0xf]
  %v66 = vld [vmem:[%s1 + $0x90] sm:$0xf]
  %v67 = vld [vmem:[%s1 + $0x94] sm:$0xf]
  %v68 = vld [vmem:[%s1 + $0x98] sm:$0xf]
  %v69 = vld [vmem:[%s1 + $0x9c] sm:$0xf]
  %v70 = vld [vmem:[%s1 + $0xa0] sm:$0xf]
  %v71 = vld [vmem:[%s1 + $0xa4] sm:$0xf]
  %v72 = vld [vmem:[%s1 + $0xa8] sm:$0xf]
  %v73 = vld [vmem:[%s1 + $0xac] sm:$0xf]
  %v74 = vld [vmem:[%s1 + $0xb0] sm:$0xf]
  %v75 = vld [vmem:[%s1 + $0xb4] sm:$0xf]
  %v76 = vld [vmem:[%s1 + $0xb8] sm:$0xf]
  %v77 = vld [vmem:[%s1 + $0xbc] sm:$0xf]
  %v78 = vld [vmem:[%s1 + $0xc0] sm:$0xf]
  %v79 = vld [vmem:[%s1 + $0xc4] sm:$0xf]
  %v80 = vld [vmem:[%s1 + $0xc8] sm:$0xf]
  %v81 = vld [vmem:[%s1 + $0xcc] sm:$0xf]
  %v82 = vld [vmem:[%s1 + $0xd0] sm:$0xf]
  %v83 = vld [vmem:[%s1 + $0xd4] sm:$0xf]
  %v84 = vld [vmem:[%s1 + $0xd8] sm:$0xf]
  %v85 = vld [vmem:[%s1 + $0xdc] sm:$0xf]
  %v86 = vld [vmem:[%s1 + $0xe0] sm:$0xf]
  %v87 = vld [vmem:[%s1 + $0xe4] sm:$0xf]
  %v88 = vld [vmem:[%s1 + $0xe8] sm:$0xf]
  %v89 = vld [vmem:[%s1 + $0xec] sm:$0xf]
  %v90 = vld [vmem:[%s1 + $0xf0] sm:$0xf]
  %v91 = vld [vmem:[%s1 + $0xf4] sm:$0xf]
  %v92 = vld [vmem:[%s1 + $0xf8] sm:$0xf]
  %v93 = vld [vmem:[%s1 + $0xfc] sm:$0xf]
  %v94 = vld [vmem:[%s2] sm:$0x1]
  %v96 = vlaneseq
  %v97 = vshrl.u32 %v96, 7
  %v98 = vsub.s32 0, %v97
  %v99 = vrot.slane %v94, %v98
  %v103 = vunpack.c.l.s4 1966171168
  %v104 = vunpack.c.0.s8 %v103
  %v105 = vlaneseq
  %v106 = vshrl.u32 %v105, 7
  %v107 = vsub.s32 %v104, %v106
  %v108 = vrot.slane %v29, %v107
  %v109 = vcombine.high %v108, %v108
  %v111 = vunpack.c.l.s4 1966171168
  %v112 = vunpack.c.0.s8 %v111
  %v113 = vlaneseq
  %v114 = vshrl.u32 %v113, 7
  %v115 = vsub.s32 %v112, %v114
  %v116 = vrot.slane %v108, %v115
  %v118 = vunpack.c.l.s4 1966171168
  %v119 = vunpack.c.0.s8 %v118
  %v120 = vlaneseq
  %v121 = vshrl.u32 %v120, 7
  %v122 = vsub.s32 %v119, %v121
  %v123 = vrot.slane %v109, %v122
  %v124 = vcombine.high %v116, %v116
  %v125 = vcombine.high %v123, %v123
  %v194 = vunpack.c.l.b16 %v30
  %v195 = vunpack.c.l.b16 %v31
  %v196 = vunpack.c.l.b16 %v32
  %v197 = vunpack.c.l.b16 %v33
  %v198 = vunpack.c.l.b16 %v34
  %v199 = vunpack.c.l.b16 %v35
  %v200 = vunpack.c.l.b16 %v36
  %v201 = vunpack.c.l.b16 %v37
  %v202 = vunpack.c.l.b16 %v38
  %v203 = vunpack.c.l.b16 %v39
  %v204 = vunpack.c.l.b16 %v40
  %v205 = vunpack.c.l.b16 %v41
  %v206 = vunpack.c.l.b16 %v42
  %v207 = vunpack.c.l.b16 %v43
  %v208 = vunpack.c.l.b16 %v44
  %v209 = vunpack.c.l.b16 %v45
  %v210 = vunpack.c.l.b16 %v46
  %v211 = vunpack.c.l.b16 %v47
  %v212 = vunpack.c.l.b16 %v48
  %v213 = vunpack.c.l.b16 %v49
  %v214 = vunpack.c.l.b16 %v50
  %v215 = vunpack.c.l.b16 %v51
  %v216 = vunpack.c.l.b16 %v52
  %v217 = vunpack.c.l.b16 %v53
  %v218 = vunpack.c.l.b16 %v54
  %v219 = vunpack.c.l.b16 %v55
  %v220 = vunpack.c.l.b16 %v56
  %v221 = vunpack.c.l.b16 %v57
  %v222 = vunpack.c.l.b16 %v58
  %v223 = vunpack.c.l.b16 %v59
  %v224 = vunpack.c.l.b16 %v60
  %v225 = vunpack.c.l.b16 %v61
  %v226 = vunpack.c.l.b16 %v62
  %v227 = vunpack.c.l.b16 %v63
  %v228 = vunpack.c.l.b16 %v64
  %v229 = vunpack.c.l.b16 %v65
  %v230 = vunpack.c.l.b16 %v66
  %v231 = vunpack.c.l.b16 %v67
  %v232 = vunpack.c.l.b16 %v68
  %v233 = vunpack.c.l.b16 %v69
  %v234 = vunpack.c.l.b16 %v70
  %v235 = vunpack.c.l.b16 %v71
  %v236 = vunpack.c.l.b16 %v72
  %v237 = vunpack.c.l.b16 %v73
  %v238 = vunpack.c.l.b16 %v74
  %v239 = vunpack.c.l.b16 %v75
  %v240 = vunpack.c.l.b16 %v76
  %v241 = vunpack.c.l.b16 %v77
  %v242 = vunpack.c.l.b16 %v78
  %v243 = vunpack.c.l.b16 %v79
  %v244 = vunpack.c.l.b16 %v80
  %v245 = vunpack.c.l.b16 %v81
  %v246 = vunpack.c.l.b16 %v82
  %v247 = vunpack.c.l.b16 %v83
  %v248 = vunpack.c.l.b16 %v84
  %v249 = vunpack.c.l.b16 %v85
  %v250 = vunpack.c.l.b16 %v86
  %v251 = vunpack.c.l.b16 %v87
  %v252 = vunpack.c.l.b16 %v88
  %v253 = vunpack.c.l.b16 %v89
  %v254 = vunpack.c.l.b16 %v90
  %v255 = vunpack.c.l.b16 %v91
  %v256 = vunpack.c.l.b16 %v92
  %v257 = vunpack.c.l.b16 %v93
  %v258 = vpack.c.b16 %v195, %v194
  %v259 = vpack.c.b16 %v197, %v196
  %v260 = vpack.c.b16 %v199, %v198
  %v261 = vpack.c.b16 %v201, %v200
  %v262 = vpack.c.b16 %v203, %v202
  %v263 = vpack.c.b16 %v205, %v204
  %v264 = vpack.c.b16 %v207, %v206
  %v265 = vpack.c.b16 %v209, %v208
  %v266 = vpack.c.b16 %v211, %v210
  %v267 = vpack.c.b16 %v213, %v212
  %v268 = vpack.c.b16 %v215, %v214
  %v269 = vpack.c.b16 %v217, %v216
  %v270 = vpack.c.b16 %v219, %v218
  %v271 = vpack.c.b16 %v221, %v220
  %v272 = vpack.c.b16 %v223, %v222
  %v273 = vpack.c.b16 %v225, %v224
  %v274 = vpack.c.b16 %v227, %v226
  %v275 = vpack.c.b16 %v229, %v228
  %v276 = vpack.c.b16 %v231, %v230
  %v277 = vpack.c.b16 %v233, %v232
  %v278 = vpack.c.b16 %v235, %v234
  %v279 = vpack.c.b16 %v237, %v236
  %v280 = vpack.c.b16 %v239, %v238
  %v281 = vpack.c.b16 %v241, %v240
  %v282 = vpack.c.b16 %v243, %v242
  %v283 = vpack.c.b16 %v245, %v244
  %v284 = vpack.c.b16 %v247, %v246
  %v285 = vpack.c.b16 %v249, %v248
  %v286 = vpack.c.b16 %v251, %v250
  %v287 = vpack.c.b16 %v253, %v252
  %v288 = vpack.c.b16 %v255, %v254
  %v289 = vpack.c.b16 %v257, %v256
  %322 = vmatprep.subr.bf16.mxu0 0
  %323 = vmatpush1.bf16.msra.mxu0 %v258
  %324 = vmatprep.subr.bf16.mxu0 0
  %325 = vmatpush1.bf16.msra.mxu0 %v259
  %326 = vmatprep.subr.bf16.mxu0 0
  %327 = vmatpush1.bf16.msra.mxu0 %v260
  %328 = vmatprep.subr.bf16.mxu0 0
  %329 = vmatpush1.bf16.msra.mxu0 %v261
  %330 = vmatprep.subr.bf16.mxu0 0
  %331 = vmatpush1.bf16.msra.mxu0 %v262
  %332 = vmatprep.subr.bf16.mxu0 0
  %333 = vmatpush1.bf16.msra.mxu0 %v263
  %334 = vmatprep.subr.bf16.mxu0 0
  %335 = vmatpush1.bf16.msra.mxu0 %v264
  %336 = vmatprep.subr.bf16.mxu0 0
  %337 = vmatpush1.bf16.msra.mxu0 %v265
  %338 = vmatprep.subr.bf16.mxu0 0
  %339 = vmatpush1.bf16.msra.mxu0 %v266
  %340 = vmatprep.subr.bf16.mxu0 0
  %341 = vmatpush1.bf16.msra.mxu0 %v267
  %342 = vmatprep.subr.bf16.mxu0 0
  %343 = vmatpush1.bf16.msra.mxu0 %v268
  %344 = vmatprep.subr.bf16.mxu0 0
  %345 = vmatpush1.bf16.msra.mxu0 %v269
  %346 = vmatprep.subr.bf16.mxu0 0
  %347 = vmatpush1.bf16.msra.mxu0 %v270
  %348 = vmatprep.subr.bf16.mxu0 0
  %349 = vmatpush1.bf16.msra.mxu0 %v271
  %350 = vmatprep.subr.bf16.mxu0 0
  %351 = vmatpush1.bf16.msra.mxu0 %v272
  %352 = vmatprep.subr.bf16.mxu0 0
  %353 = vmatpush1.bf16.msra.mxu0 %v273
  %354 = vmatprep.mubr.bf16.mxu0 %v123
  %355 = vmatmul.mubr.bf16.gmra.mrb[0].mxu0 %v116
  %v356 = vpop.f32.mrb[0].mxu0
  %v357 = vadd.f32 %v99, %v356
  %v358 = vpop.f32.mrb[0].mxu0
  %v359 = vpop.f32.mrb[0].mxu0
  %v360 = vpop.f32.mrb[0].mxu0
  %361 = vdwg.mxu0
  %362 = vmatprep.subr.bf16.mxu0 0
  %363 = vmatpush1.bf16.msra.mxu0 %v274
  %364 = vmatprep.subr.bf16.mxu0 0
  %365 = vmatpush1.bf16.msra.mxu0 %v275
  %366 = vmatprep.subr.bf16.mxu0 0
  %367 = vmatpush1.bf16.msra.mxu0 %v276
  %368 = vmatprep.subr.bf16.mxu0 0
  %369 = vmatpush1.bf16.msra.mxu0 %v277
  %370 = vmatprep.subr.bf16.mxu0 0
  %371 = vmatpush1.bf16.msra.mxu0 %v278
  %372 = vmatprep.subr.bf16.mxu0 0
  %373 = vmatpush1.bf16.msra.mxu0 %v279
  %374 = vmatprep.subr.bf16.mxu0 0
  %375 = vmatpush1.bf16.msra.mxu0 %v280
  %376 = vmatprep.subr.bf16.mxu0 0
  %377 = vmatpush1.bf16.msra.mxu0 %v281
  %378 = vmatprep.subr.bf16.mxu0 0
  %379 = vmatpush1.bf16.msra.mxu0 %v282
  %380 = vmatprep.subr.bf16.mxu0 0
  %381 = vmatpush1.bf16.msra.mxu0 %v283
  %382 = vmatprep.subr.bf16.mxu0 0
  %383 = vmatpush1.bf16.msra.mxu0 %v284
  %384 = vmatprep.subr.bf16.mxu0 0
  %385 = vmatpush1.bf16.msra.mxu0 %v285
  %386 = vmatprep.subr.bf16.mxu0 0
  %387 = vmatpush1.bf16.msra.mxu0 %v286
  %388 = vmatprep.subr.bf16.mxu0 0
  %389 = vmatpush1.bf16.msra.mxu0 %v287
  %390 = vmatprep.subr.bf16.mxu0 0
  %391 = vmatpush1.bf16.msra.mxu0 %v288
  %392 = vmatprep.subr.bf16.mxu0 0
  %393 = vmatpush1.bf16.msra.mxu0 %v289
  %394 = vmatprep.mubr.bf16.mxu0 %v125
  %395 = vmatmul.mubr.bf16.gmra.mrb[0].mxu0 %v124
  %v396 = vpop.f32.mrb[0].mxu0
  %v397 = vadd.f32 %v357, %v396
  %v398 = vpop.f32.mrb[0].mxu0
  %v399 = vpop.f32.mrb[0].mxu0
  %v400 = vpop.f32.mrb[0].mxu0
  %401 = vdwg.mxu0
  %vm402 = vcmask 517120
  %v403 = vsel %vm402, %v397, 0.0
  %v404 = vrot.slane %v403, 4
  %v405 = vadd.f32 %v403, %v404
  %v406 = vrot.slane %v405, 2
  %v407 = vadd.f32 %v405, %v406
  %v408 = vrot.slane %v407, 1
  %v409 = vadd.f32 %v407, %v408
  %v410 = vmul.f32 %v409, 0.5
  %v411 = vsub.f32 %v397, %v410
  %v412 = vmul.f32 %v411, %v411
  %v413 = vsel %vm402, %v412, 0.0
  %v414 = vrot.slane %v413, 4
  %v415 = vadd.f32 %v413, %v414
  %v416 = vrot.slane %v415, 2
  %v417 = vadd.f32 %v415, %v416
  %v418 = vrot.slane %v417, 1
  %v419 = vadd.f32 %v417, %v418
  %v420 = vmul.f32 %v419, 0.5
  %v421 = vld [vmem:[%s3] sm:$0x1]
  %v422 = vadd.f32 %v420, 1e-05
  %v423 = vrsqrt.pop %v422
  %v424 = vmul.f32 %v421, %v423
  %v426 = vlaneseq
  %v427 = vshrl.u32 %v426, 7
  %v428 = vsub.s32 0, %v427
  %v429 = vrot.slane %v424, %v428
  %v431 = vmul.f32 %v411, %v429
  %v432 = vld [vmem:[%s4] sm:$0x1]
  %v434 = vlaneseq
  %v435 = vshrl.u32 %v434, 7
  %v436 = vsub.s32 0, %v435
  %v437 = vrot.slane %v432, %v436
  %v439 = vadd.f32 %v431, %v437
  %v440 = vmul.f32 %v439, 0.2
  %v441 = vmax.f32 %v439, %v440
  %v442 = vld [vmem:[%s5] sm:$0x1]
  %v444 = vlaneseq
  %v445 = vshrl.u32 %v444, 7
  %v446 = vsub.s32 0, %v445
  %v447 = vrot.slane %v442, %v446
  %v449 = vmul.f32 %v441, %v447
  %v450 = vsel %vm402, %v449, 0.0
  %451 = vadd.xlane.f32.xlu0 %v450
  %v452 = vpop.xlane.xlu0 %451
  %v453 = vld [vmem:[#allocation2] sm:$0x1]
  %v455 = vlaneseq
  %v456 = vshrl.u32 %v455, 7
  %v457 = vsub.s32 0, %v456
  %v458 = vrot.slane %v453, %v457
  %v460 = vadd.f32 %v452, %v458
  %v461 = vxor.u32 %v460, 2147483648
  %v462 = vmul.f32 %v461, 1.442695
  %v463 = vpow.pop %v462
  %v464 = vadd.f32 %v463, 1.0
  %v465 = vrcp.pop %v464
  %v466 = vmul.f32 1.0, %v465
  %vm467 = vcmask 1024
  %468 = vst.msk [vmem:[%s7] sm:$0x3] %vm467, %v466
  // Predicated region
  $region30: #{discriminator_forward.7} parent=0 // pred_check
    _
  $region31: #{discriminator_forward.7} parent=0 // pred_check_branch
    %470 = sbr.rel (0) target = $region33
  $region32: #{discriminator_forward.7} parent=0 // pred_region
    _
  $region33: #{discriminator_forward.7} parent=0 // pred_fallthru
    _
  // Predicated region
  $region34: #{discriminator_forward.7} parent=0 // pred_check
    _
  $region35: #{discriminator_forward.7} parent=0 // pred_check_branch
    %472 = sbr.rel (0) target = $region37
  $region36: #{discriminator_forward.7} parent=0 // pred_region
    _
  $region37: #{discriminator_forward.7} parent=0 // pred_fallthru
    _

</llo_original>
